<compile_context>
chip_gen: v5e
topology: v5e:2x2
jax: 0.10.0
libtpu: 0.0.40
codegen_flags: <defaults>
</compile_context>

<pallas_src>
import jax
import jax.numpy as jnp
from jax.experimental import pallas as pl
from jax.experimental.pallas import tpu as pltpu


# ---------------------------------------------------------------------------
# Kernel
# ---------------------------------------------------------------------------
def _make_kernel(shortlist):
    """Kernel closed over the (static) shortlist width.

    Ref order: x, w1_packed, w2_packed, bias_packed, out
    """

    def kernel(x_ref, w1p_ref, w2p_ref, b_ref, out_ref):
        x = x_ref[...]                                # [tb, D] compute dtype

        # Fused first stage: head + all (zero-padded) tail projections in one
        # MXU pass.  [tb, D] @ [D, W1pad] -> f32 [tb, W1pad], W1pad % 128 == 0.
        z = jnp.dot(x, w1p_ref[...], preferred_element_type=jnp.float32)

        # Head logits: direct sub-range store (shortlist is a multiple of 128
        # in the example -> unmasked vst, no concat / temporary).
        out_ref[:, :shortlist] = z[:, :shortlist].astype(out_ref.dtype)

        # Second stage: one block-diagonal matmul covering all tail clusters.
        # The slice starts at a 128-lane boundary, so no relayout is needed.
        h = z[:, shortlist:].astype(x.dtype)          # [tb, P_pad]
        tail = jnp.dot(h, w2p_ref[...],
                       preferred_element_type=jnp.float32)  # [tb, V - S]
        tail = tail + b_ref[...]                      # single f32 bias add
        out_ref[:, shortlist:] = tail.astype(out_ref.dtype)

    return kernel


# ---------------------------------------------------------------------------
# Chip-aware sizing helpers
# ---------------------------------------------------------------------------
def _round_up(x, m):
    return ((x + m - 1) // m) * m


def _tpu_params():
    """Best-effort (VMEM capacity bytes, TensorCores per chip).

    Falls back to the conservative single-core / 128 MiB view (v5e/v6e) if the
    query or its attribute names are unavailable — same behavior as the
    previously-validated kernel.
    """
    vmem_cap = 128 * 1024 * 1024
    num_cores = 1
    try:
        info = pltpu.get_tpu_info()
        for name in ("vmem_capacity_bytes", "vmem_bytes", "vmem_size_bytes"):
            v = getattr(info, name, None)
            if v:
                vmem_cap = int(v)
                break
        for name in ("num_tensorcores", "tensorcores_per_chip",
                     "num_cores", "cores_per_chip"):
            c = getattr(info, name, None)
            if c:
                num_cores = int(c)
                break
    except Exception:
        pass
    return vmem_cap, num_cores


def _pick_block_b(B, bytes_per_row, num_cores, vmem_cap):
    """Pick the batch tile.

    Multi-core chips: require >= 2 grid steps *per core* so the output
    writeback DMA overlaps compute on every core.  Single-core chips: no
    step-count constraint (per-step overhead dominates at these sizes), allow
    tiles up to 512 rows, VMEM permitting.
    """
    min_steps = 2 * num_cores if num_cores > 1 else 1
    budget = vmem_cap // 3            # leave room for weights + compiler scratch
    candidates = (512, 256, 128, 64, 32, 16, 8)
    for cand in candidates:
        if B % cand:
            continue
        if cand * bytes_per_row > budget:
            continue
        if B // cand < min_steps:
            continue
        return cand
    for cand in candidates:           # relax the step-count requirement
        if B % cand == 0 and cand * bytes_per_row <= budget:
            return cand
    return B


def _vmem_limit_bytes(block_b, bytes_per_row, weight_bytes, weight_bufs,
                      vmem_cap):
    """Derive vmem_limit from the actual tile footprint, clamped under
    physical VMEM (headroom for compiler scratch)."""
    footprint = block_b * bytes_per_row + weight_bufs * weight_bytes
    limit = max(32 * 1024 * 1024, 2 * footprint)
    return int(min(limit, int(vmem_cap * 0.9)))


# ---------------------------------------------------------------------------
# Wrapper
# ---------------------------------------------------------------------------
def adaptive_softmax_forward(x, head_w, tail_w1s, tail_w2s, tail_bs,
                             cutoffs, *, block_b=None, out_dtype=None):
    """Pallas implementation of AdaptiveSoftmax.forward (eval mode).

    Args:
      x:        [B, D] inputs (bf16 recommended).
      head_w:   [D, shortlist] head projection weight (pre-transposed).
      tail_w1s: list of [D, P_i] first-stage tail weights.
      tail_w2s: list of [P_i, C_{i+1}] second-stage tail weights.
      tail_bs:  list of [1, C_{i+1}] tail biases.
      cutoffs:  vocab cutoffs, e.g. [128, 256, 512].
    Returns:
      [B, cutoffs[-1]] logits in `out_dtype` (defaults to x.dtype).
    """
    B, D = x.shape
    cutoff_ends = [0] + list(cutoffs)
    V = cutoff_ends[-1]
    n_clusters = len(cutoffs) - 1
    shortlist = cutoff_ends[1]
    proj_dims = [int(w.shape[1]) for w in tail_w1s]
    assert n_clusters >= 1, "need at least one tail cluster"

    if out_dtype is None:
        out_dtype = x.dtype
    compute_dtype = x.dtype
    x_isz = jnp.dtype(compute_dtype).itemsize
    o_isz = jnp.dtype(out_dtype).itemsize

    # -- Pack weights -------------------------------------------------------
    # Stage 1: head + all tail first-stage weights, zero-padded so the packed
    # width is a multiple of 128 (lane-dense z, 128-aligned tail slice).
    w1_raw = shortlist + sum(proj_dims)
    w1_width = _round_up(w1_raw, 128)
    p_pad = w1_width - shortlist

    w1_packed = jnp.zeros((D, w1_width), compute_dtype)
    w1_packed = w1_packed.at[:, :shortlist].set(head_w.astype(compute_dtype))
    off = shortlist
    for w in tail_w1s:
        w1_packed = w1_packed.at[:, off:off + w.shape[1]].set(
            w.astype(compute_dtype))
        off += w.shape[1]

    # Stage 2: block-diagonal [p_pad, V - shortlist]; rows beyond sum(P_i) are
    # zero, so the padded z columns contribute exactly 0.
    w2_packed = jnp.zeros((p_pad, V - shortlist), compute_dtype)
    row, col = 0, 0
    for i in range(n_clusters):
        p = int(tail_w2s[i].shape[0])
        c = int(tail_w2s[i].shape[1])
        w2_packed = w2_packed.at[row:row + p, col:col + c].set(
            tail_w2s[i].astype(compute_dtype))
        row += p
        col += c

    # Tail biases: one f32 row, added once to the f32 tail accumulator.
    b_packed = jnp.concatenate(
        [b.reshape(1, -1).astype(jnp.float32) for b in tail_bs], axis=1)

    weight_bytes = (w1_packed.size * jnp.dtype(compute_dtype).itemsize
                    + w2_packed.size * jnp.dtype(compute_dtype).itemsize
                    + b_packed.size * 4)

    # -- Chip-aware tiling ---------------------------------------------------
    vmem_cap, num_cores = _tpu_params()
    bytes_per_row = 2 * (D * x_isz + V * o_isz)   # double-buffered x + out rows
    if block_b is None:
        block_b = _pick_block_b(B, bytes_per_row, num_cores, vmem_cap)
    assert B % block_b == 0, "batch must be divisible by block_b"

    kernel = _make_kernel(shortlist)

    # -- pallas_call builder (optionally single-buffering resident weights) --
    def build(single_buffer_weights):
        if single_buffer_weights:
            def resident(shape):
                return pl.BlockSpec(shape, lambda i: (0,) * len(shape),
                                    pipeline_mode=pl.Buffered(1))
            weight_bufs = 1
        else:
            def resident(shape):
                return pl.BlockSpec(shape, lambda i: (0,) * len(shape))
            weight_bufs = 2

        in_specs = [pl.BlockSpec((block_b, D), lambda i: (i, 0)),   # x
                    resident(w1_packed.shape),
                    resident(w2_packed.shape),
                    resident(b_packed.shape)]
        out_spec = pl.BlockSpec((block_b, V), lambda i: (i, 0))

        vmem_limit = _vmem_limit_bytes(block_b, bytes_per_row, weight_bytes,
                                       weight_bufs, vmem_cap)
        return pl.pallas_call(
            kernel,
            out_shape=jax.ShapeDtypeStruct((B, V), out_dtype),
            grid=(B // block_b,),
            in_specs=in_specs,
            out_specs=out_spec,
            compiler_params=pltpu.CompilerParams(
                dimension_semantics=("parallel",),
                vmem_limit_bytes=vmem_limit,
            ),
        )

    args = (x, w1_packed, w2_packed, b_packed)
    try:
        return build(True)(*args)
    except Exception:
        # pl.Buffered(1) not supported by this jax build / lowering path;
        # fall back to default double-buffered resident weights.
        return build(False)(*args)


# ---------------------------------------------------------------------------
# Plain-JAX reference mirroring the kernel's precision choices
# ---------------------------------------------------------------------------
def _reference_forward(x, head_w, tail_w1s, tail_w2s, tail_bs, cutoffs,
                       out_dtype):
    compute_dtype = x.dtype
    head = jnp.dot(x, head_w.astype(compute_dtype),
                   preferred_element_type=jnp.float32)
    parts = [head]
    for i in range(len(cutoffs) - 1):
        h = jnp.dot(x, tail_w1s[i].astype(compute_dtype),
                    preferred_element_type=jnp.float32).astype(compute_dtype)
        c = jnp.dot(h, tail_w2s[i].astype(compute_dtype),
                    preferred_element_type=jnp.float32)
        c = c + tail_bs[i].astype(jnp.float32)
        parts.append(c)
    return jnp.concatenate(parts, axis=-1).astype(out_dtype)


# ---------------------------------------------------------------------------
if __name__ == "__main__":
    # Small, TPU-friendly shapes:
    #   batch B = 256, hidden D = 64, cutoffs -> vocab V = 512
    #   (cutoff boundaries are multiples of 128 -> lane-dense sub-range stores)
    B = 256
    D = 64
    cutoffs = [128, 256, 512]
    cutoff_ends = [0] + cutoffs
    cluster_sizes = [cutoff_ends[i + 1] - cutoff_ends[i]
                     for i in range(len(cutoffs))]
    shortlist = cluster_sizes[0]
    n_clusters = len(cluster_sizes) - 1

    key = jax.random.PRNGKey(0)
    keys = jax.random.split(key, 2 + 2 * n_clusters)

    # bf16 activations / weights, f32 accumulation inside the kernel.
    x = jax.random.normal(keys[0], (B, D), jnp.float32).astype(jnp.bfloat16)

    scale = 1.0 / jnp.sqrt(jnp.float32(D))
    head_w = (jax.random.normal(keys[1], (D, shortlist), jnp.float32)
              * scale).astype(jnp.bfloat16)

    tail_w1s, tail_w2s, tail_bs = [], [], []
    for i in range(n_clusters):
        dim_factor = 2 if i == 0 else 4
        proj_dim = D // dim_factor
        w1 = (jax.random.normal(keys[2 + 2 * i], (D, proj_dim), jnp.float32)
              * scale).astype(jnp.bfloat16)
        w2 = (jax.random.normal(keys[3 + 2 * i],
                                (proj_dim, cluster_sizes[i + 1]), jnp.float32)
              / jnp.sqrt(jnp.float32(proj_dim))).astype(jnp.bfloat16)
        b = jnp.zeros((1, cluster_sizes[i + 1]), jnp.float32)  # torch.zeros init
        tail_w1s.append(w1)
        tail_w2s.append(w2)
        tail_bs.append(b)

    out = adaptive_softmax_forward(x, head_w, tail_w1s, tail_w2s, tail_bs,
                                   cutoffs)
    out = jax.block_until_ready(out)

    ref = _reference_forward(x, head_w, tail_w1s, tail_w2s, tail_bs,
                             cutoffs, out.dtype)
    assert out.shape == (B, cutoffs[-1])
    assert jnp.allclose(out.astype(jnp.float32), ref.astype(jnp.float32),
                        atol=2e-2, rtol=2e-2)

    print("KERNEL_OK")
</pallas_src>

<mosaic_0001>
module attributes {stable_mosaic.version = 11 : i64} {
  func.func @kernel(%arg0: i32, %arg1: memref<256x64xbf16, #tpu.memory_space<vmem>>, %arg2: memref<64x256xbf16, #tpu.memory_space<vmem>>, %arg3: memref<128x384xbf16, #tpu.memory_space<vmem>>, %arg4: memref<1x384xf32, #tpu.memory_space<vmem>>, %arg5: memref<256x512xbf16, #tpu.memory_space<vmem>>) attributes {dimension_semantics = [#tpu.dimension_semantics<parallel>], iteration_bounds = array<i64: 1>, scalar_prefetch = 0 : i64, scratch_operands = 0 : i64, tpu.core_type = #tpu.core_type<tc>, window_params = [{transform_indices = @transform_0, window_bounds = array<i64: 256, 64>}, {pipeline_mode = #tpu.pipeline_mode<synchronous>, transform_indices = @transform_1, window_bounds = array<i64: 64, 256>}, {pipeline_mode = #tpu.pipeline_mode<synchronous>, transform_indices = @transform_2, window_bounds = array<i64: 128, 384>}, {pipeline_mode = #tpu.pipeline_mode<synchronous>, transform_indices = @transform_3, window_bounds = array<i64: 1, 384>}, {transform_indices = @transform_4, window_bounds = array<i64: 256, 512>}]} {
    %c0 = arith.constant 0 : index
    %c0_0 = arith.constant 0 : index
    %0 = vector.load %arg1[%c0, %c0_0] : memref<256x64xbf16, #tpu.memory_space<vmem>>, vector<256x64xbf16>
    %c0_1 = arith.constant 0 : index
    %c0_2 = arith.constant 0 : index
    %1 = vector.load %arg2[%c0_1, %c0_2] : memref<64x256xbf16, #tpu.memory_space<vmem>>, vector<64x256xbf16>
    %cst = arith.constant dense<0.000000e+00> : vector<256x256xf32>
    %2 = tpu.matmul %0, %1, %cst {dimension_numbers = #tpu.dot_dimension_numbers<[1], [0], [0], [1], [0, 0, 1, 1], [], []>} : vector<256x64xbf16>, vector<64x256xbf16>, vector<256x256xf32> -> vector<256x256xf32>
    %3 = vector.extract_strided_slice %2 {offsets = [0, 0], sizes = [256, 128], strides = [1, 1]} : vector<256x256xf32> to vector<256x128xf32>
    %4 = arith.truncf %3 : vector<256x128xf32> to vector<256x128xbf16>
    %c0_3 = arith.constant 0 : index
    %c0_4 = arith.constant 0 : index
    %5 = vector.load %arg5[%c0_3, %c0_4] : memref<256x512xbf16, #tpu.memory_space<vmem>>, vector<256x128xbf16>
    tpu.vector_store %arg5[%c0_3, %c0_4], %4 {strides = array<i32>} : memref<256x512xbf16, #tpu.memory_space<vmem>>, vector<256x128xbf16>,
    %6 = vector.extract_strided_slice %2 {offsets = [0, 128], sizes = [256, 128], strides = [1, 1]} : vector<256x256xf32> to vector<256x128xf32>
    %7 = arith.truncf %6 : vector<256x128xf32> to vector<256x128xbf16>
    %c0_5 = arith.constant 0 : index
    %c0_6 = arith.constant 0 : index
    %8 = vector.load %arg3[%c0_5, %c0_6] : memref<128x384xbf16, #tpu.memory_space<vmem>>, vector<128x384xbf16>
    %cst_7 = arith.constant dense<0.000000e+00> : vector<256x384xf32>
    %9 = tpu.matmul %7, %8, %cst_7 {dimension_numbers = #tpu.dot_dimension_numbers<[1], [0], [0], [1], [0, 0, 1, 1], [], []>} : vector<256x128xbf16>, vector<128x384xbf16>, vector<256x384xf32> -> vector<256x384xf32>
    %c0_8 = arith.constant 0 : index
    %c0_9 = arith.constant 0 : index
    %10 = vector.load %arg4[%c0_8, %c0_9] : memref<1x384xf32, #tpu.memory_space<vmem>>, vector<1x384xf32>
    %11 = vector.broadcast %10 : vector<1x384xf32> to vector<256x384xf32>
    %12 = arith.addf %9, %11 : vector<256x384xf32>
    %13 = arith.truncf %12 : vector<256x384xf32> to vector<256x384xbf16>
    %c0_10 = arith.constant 0 : index
    %c128 = arith.constant 128 : index
    %14 = vector.load %arg5[%c0_10, %c128] : memref<256x512xbf16, #tpu.memory_space<vmem>>, vector<256x384xbf16>
    tpu.vector_store %arg5[%c0_10, %c128], %13 {strides = array<i32>} : memref<256x512xbf16, #tpu.memory_space<vmem>>, vector<256x384xbf16>,
    return
  }
  func.func @transform_0(%arg0: i32) -> (i32, i32) {
    %c0_i32 = arith.constant 0 : i32
    %c0_i32_0 = arith.constant 0 : i32
    return %arg0, %c0_i32 : i32, i32
  }
  func.func @transform_1(%arg0: i32) -> (i32, i32) {
    %c0_i32 = arith.constant 0 : i32
    %c0_i32_0 = arith.constant 0 : i32
    %c0_i32_1 = arith.constant 0 : i32
    return %c0_i32, %c0_i32_0 : i32, i32
  }
  func.func @transform_2(%arg0: i32) -> (i32, i32) {
    %c0_i32 = arith.constant 0 : i32
    %c0_i32_0 = arith.constant 0 : i32
    %c0_i32_1 = arith.constant 0 : i32
    return %c0_i32, %c0_i32_0 : i32, i32
  }
  func.func @transform_3(%arg0: i32) -> (i32, i32) {
    %c0_i32 = arith.constant 0 : i32
    %c0_i32_0 = arith.constant 0 : i32
    %c0_i32_1 = arith.constant 0 : i32
    return %c0_i32, %c0_i32_0 : i32, i32
  }
  func.func @transform_4(%arg0: i32) -> (i32, i32) {
    %c0_i32 = arith.constant 0 : i32
    %c0_i32_0 = arith.constant 0 : i32
    return %arg0, %c0_i32 : i32, i32
  }
}

module attributes {stable_mosaic.version = 11 : i64} {
  func.func @kernel(%arg0: i32, %arg1: memref<256x64xbf16, #tpu.memory_space<vmem>>, %arg2: memref<64x256xbf16, #tpu.memory_space<vmem>>, %arg3: memref<128x384xbf16, #tpu.memory_space<vmem>>, %arg4: memref<1x384xf32, #tpu.memory_space<vmem>>, %arg5: memref<256x512xbf16, #tpu.memory_space<vmem>>) attributes {dimension_semantics = [#tpu.dimension_semantics<parallel>], iteration_bounds = array<i64: 1>, scalar_prefetch = 0 : i64, scratch_operands = 0 : i64, tpu.core_type = #tpu.core_type<tc>, window_params = [{transform_indices = @transform_0, window_bounds = array<i64: 256, 64>}, {pipeline_mode = #tpu.pipeline_mode<synchronous>, transform_indices = @transform_1, window_bounds = array<i64: 64, 256>}, {pipeline_mode = #tpu.pipeline_mode<synchronous>, transform_indices = @transform_2, window_bounds = array<i64: 128, 384>}, {pipeline_mode = #tpu.pipeline_mode<synchronous>, transform_indices = @transform_3, window_bounds = array<i64: 1, 384>}, {transform_indices = @transform_4, window_bounds = array<i64: 256, 512>}]} {
    %c0 = arith.constant 0 : index
    %c0_0 = arith.constant 0 : index
    %0 = vector.load %arg1[%c0, %c0_0] : memref<256x64xbf16, #tpu.memory_space<vmem>>, vector<256x64xbf16>
    %c0_1 = arith.constant 0 : index
    %c0_2 = arith.constant 0 : index
    %1 = vector.load %arg2[%c0_1, %c0_2] : memref<64x256xbf16, #tpu.memory_space<vmem>>, vector<64x256xbf16>
    %cst = arith.constant dense<0.000000e+00> : vector<256x256xf32>
    %2 = tpu.matmul %0, %1, %cst {dimension_numbers = #tpu.dot_dimension_numbers<[1], [0], [0], [1], [0, 0, 1, 1], [], []>} : vector<256x64xbf16>, vector<64x256xbf16>, vector<256x256xf32> -> vector<256x256xf32>
    %3 = vector.extract_strided_slice %2 {offsets = [0, 0], sizes = [256, 128], strides = [1, 1]} : vector<256x256xf32> to vector<256x128xf32>
    %4 = arith.truncf %3 : vector<256x128xf32> to vector<256x128xbf16>
    %c0_3 = arith.constant 0 : index
    %c0_4 = arith.constant 0 : index
    %5 = vector.load %arg5[%c0_3, %c0_4] : memref<256x512xbf16, #tpu.memory_space<vmem>>, vector<256x128xbf16>
    tpu.vector_store %arg5[%c0_3, %c0_4], %4 {strides = array<i32>} : memref<256x512xbf16, #tpu.memory_space<vmem>>, vector<256x128xbf16>,
    %6 = vector.extract_strided_slice %2 {offsets = [0, 128], sizes = [256, 128], strides = [1, 1]} : vector<256x256xf32> to vector<256x128xf32>
    %7 = arith.truncf %6 : vector<256x128xf32> to vector<256x128xbf16>
    %c0_5 = arith.constant 0 : index
    %c0_6 = arith.constant 0 : index
    %8 = vector.load %arg3[%c0_5, %c0_6] : memref<128x384xbf16, #tpu.memory_space<vmem>>, vector<128x384xbf16>
    %cst_7 = arith.constant dense<0.000000e+00> : vector<256x384xf32>
    %9 = tpu.matmul %7, %8, %cst_7 {dimension_numbers = #tpu.dot_dimension_numbers<[1], [0], [0], [1], [0, 0, 1, 1], [], []>} : vector<256x128xbf16>, vector<128x384xbf16>, vector<256x384xf32> -> vector<256x384xf32>
    %c0_8 = arith.constant 0 : index
    %c0_9 = arith.constant 0 : index
    %10 = vector.load %arg4[%c0_8, %c0_9] : memref<1x384xf32, #tpu.memory_space<vmem>>, vector<1x384xf32>
    %11 = vector.broadcast %10 : vector<1x384xf32> to vector<256x384xf32>
    %12 = arith.addf %9, %11 : vector<256x384xf32>
    %13 = arith.truncf %12 : vector<256x384xf32> to vector<256x384xbf16>
    %c0_10 = arith.constant 0 : index
    %c128 = arith.constant 128 : index
    %14 = vector.load %arg5[%c0_10, %c128] : memref<256x512xbf16, #tpu.memory_space<vmem>>, vector<256x384xbf16>
    tpu.vector_store %arg5[%c0_10, %c128], %13 {strides = array<i32>} : memref<256x512xbf16, #tpu.memory_space<vmem>>, vector<256x384xbf16>,
    return
  }
  func.func @transform_0(%arg0: i32) -> (i32, i32) {
    %c0_i32 = arith.constant 0 : i32
    %c0_i32_0 = arith.constant 0 : i32
    return %arg0, %c0_i32 : i32, i32
  }
  func.func @transform_1(%arg0: i32) -> (i32, i32) {
    %c0_i32 = arith.constant 0 : i32
    %c0_i32_0 = arith.constant 0 : i32
    %c0_i32_1 = arith.constant 0 : i32
    return %c0_i32, %c0_i32_0 : i32, i32
  }
  func.func @transform_2(%arg0: i32) -> (i32, i32) {
    %c0_i32 = arith.constant 0 : i32
    %c0_i32_0 = arith.constant 0 : i32
    %c0_i32_1 = arith.constant 0 : i32
    return %c0_i32, %c0_i32_0 : i32, i32
  }
  func.func @transform_3(%arg0: i32) -> (i32, i32) {
    %c0_i32 = arith.constant 0 : i32
    %c0_i32_0 = arith.constant 0 : i32
    %c0_i32_1 = arith.constant 0 : i32
    return %c0_i32, %c0_i32_0 : i32, i32
  }
  func.func @transform_4(%arg0: i32) -> (i32, i32) {
    %c0_i32 = arith.constant 0 : i32
    %c0_i32_0 = arith.constant 0 : i32
    return %arg0, %c0_i32 : i32, i32
  }
}

</mosaic_0001>

<llo_original>
// kernel: tpu_custom_call.1
$region0: #{tpu_custom_call.1}
  #allocation0 [shape = 'u32[]', space=smem, size = 0x4, offset = 0x4, fixed_abs, tag = 'smem constant byte address 0x4 - core index']
  #allocation1 [shape = 'u32[72,128]{1,0:T(1,128)}', space=vmem, size = 0x9000, scoped, tag = 'internal scratch']
  %s0 = inlined_call_operand.vmem [shape: bf16[256,64], index: 0, kind: input, shape index: {}]
  %s1 = inlined_call_operand.hbm [shape: bf16[64,256], index: 1, kind: input, shape index: {}]
  %s2 = inlined_call_operand.vmem [shape: bf16[128,384], index: 2, kind: input, shape index: {}]
  %s3 = inlined_call_operand.hbm [shape: f32[1,384], index: 3, kind: input, shape index: {}]
  %s4 = inlined_call_operand.hbm [shape: bf16[256,512], index: 4, kind: output, shape index: {}]
  %s5 = sld [smem:[#allocation0]]
  $region34: #{tpu_custom_call.1} parent=0
    _
  %s7 = ssub.s32 1, %s5
  %s8 = scalar_select 0, %s7, %s5
  $region1: #{tpu_custom_call.1} parent=0
    #allocation2 [shape = 'u8[32768]{0}', space=vmem, size = 0x8000, scoped, tag = 'input window, operand 1, single buffered']
    #allocation3 [shape = 's32[1]{0}', space=sflag, size = 0x4, scoped, tag = 'scoped memory for tpu_custom_call.1']
    #allocation4 [shape = 's32[1]{0}', space=sflag, size = 0x4, scoped, tag = 'scoped memory for tpu_custom_call.1']
    #allocation5 [shape = 'u8[1536]{0}', space=vmem, size = 0x800, scoped, tag = 'input window, operand 3, single buffered']
    #allocation6 [shape = 's32[1]{0}', space=sflag, size = 0x4, scoped, tag = 'scoped memory for tpu_custom_call.1']
    #allocation7 [shape = 'u8[262144]{0}', space=vmem, size = 0x40000, scoped, tag = 'output window, operand 0, single buffered']
    %9 = vsyncpa [#allocation3], 0
    %10 = vsyncpa [#allocation6], 0
    %11 = vsyncpa [#allocation4], 0
    // Predicated region
    $region2: #{tpu_custom_call.1} parent=1 // pred_check
      _
    $region3: #{tpu_custom_call.1} parent=1 // pred_check_branch
      %13 = sbr.rel (0) target = $region5
    $region4: #{tpu_custom_call.1} parent=1 // pred_region
      _
    $region5: #{tpu_custom_call.1} parent=1 // pred_fallthru
      _
    // Predicated region
    $region6: #{tpu_custom_call.1} parent=1 // pred_check
      _
    $region7: #{tpu_custom_call.1} parent=1 // pred_check_branch
      %15 = sbr.rel (0) target = $region9
    $region8: #{tpu_custom_call.1} parent=1 // pred_region
      %17 = vsyncadd [#allocation3], 0
      %s18 = sshll.u32 %s1, 4
      %s19 = int_to_ptr.hbm [resolvable:$true] %s18
      %s20 = sshll.u32 [#allocation2], 4
      %s21 = int_to_ptr.vmem [resolvable:$true] %s20
      %26 = dma.hbm_to_vmem [thread:$0]  %s19, 1024, %s21, [#allocation3], 128, 128, 8
    $region9: #{tpu_custom_call.1} parent=1 // pred_fallthru
      _
    // Predicated region
    $region10: #{tpu_custom_call.1} parent=1 // pred_check
      _
    $region11: #{tpu_custom_call.1} parent=1 // pred_check_branch
      %28 = sbr.rel (0) target = $region13
    $region12: #{tpu_custom_call.1} parent=1 // pred_region
      _
    $region13: #{tpu_custom_call.1} parent=1 // pred_fallthru
      _
    // Predicated region
    $region14: #{tpu_custom_call.1} parent=1 // pred_check
      _
    $region15: #{tpu_custom_call.1} parent=1 // pred_check_branch
      %30 = sbr.rel (0) target = $region17
    $region16: #{tpu_custom_call.1} parent=1 // pred_region
      %32 = vsyncadd [#allocation6], 0
      %s34 = sshll.u32 %s3, 4
      %s35 = int_to_ptr.hbm [resolvable:$true] %s34
      %s36 = sshll.u32 [#allocation5], 4
      %s37 = int_to_ptr.vmem [resolvable:$true] %s36
      %39 = dma.hbm_to_vmem [thread:$0]  %s35, 48, %s37, [#allocation6]
    $region17: #{tpu_custom_call.1} parent=1 // pred_fallthru
      _
    // Predicated region
    $region18: #{tpu_custom_call.1} parent=1 // pred_check
      _
    $region19: #{tpu_custom_call.1} parent=1 // pred_check_branch
      %41 = sbr.rel (0) target = $region21
    $region20: #{tpu_custom_call.1} parent=1 // pred_region
      %43 = dma.done [#allocation3], 1024
    $region21: #{tpu_custom_call.1} parent=1 // pred_fallthru
      _
    // Predicated region
    $region22: #{tpu_custom_call.1} parent=1 // pred_check
      _
    $region23: #{tpu_custom_call.1} parent=1 // pred_check_branch
      %45 = sbr.rel (0) target = $region25
    $region24: #{tpu_custom_call.1} parent=1 // pred_region
      %47 = dma.done [#allocation6], 48
    $region25: #{tpu_custom_call.1} parent=1 // pred_fallthru
      _
    %v49 = vld [vmem:[%s0] sm:$0xf]
    %v50 = vld [vmem:[%s0 + $0x4] sm:$0xf]
    %v51 = vld [vmem:[%s0 + $0x8] sm:$0xf]
    %v52 = vld [vmem:[%s0 + $0xc] sm:$0xf]
    %v53 = vld [vmem:[%s0 + $0x10] sm:$0xf]
    %v54 = vld [vmem:[%s0 + $0x14] sm:$0xf]
    %v55 = vld [vmem:[%s0 + $0x18] sm:$0xf]
    %v56 = vld [vmem:[%s0 + $0x1c] sm:$0xf]
    %v57 = vld [vmem:[%s0 + $0x20] sm:$0xf]
    %v58 = vld [vmem:[%s0 + $0x24] sm:$0xf]
    %v59 = vld [vmem:[%s0 + $0x28] sm:$0xf]
    %v60 = vld [vmem:[%s0 + $0x2c] sm:$0xf]
    %v61 = vld [vmem:[%s0 + $0x30] sm:$0xf]
    %v62 = vld [vmem:[%s0 + $0x34] sm:$0xf]
    %v63 = vld [vmem:[%s0 + $0x38] sm:$0xf]
    %v64 = vld [vmem:[%s0 + $0x3c] sm:$0xf]
    %v65 = vld [vmem:[%s0 + $0x40] sm:$0xf]
    %v66 = vld [vmem:[%s0 + $0x44] sm:$0xf]
    %v67 = vld [vmem:[%s0 + $0x48] sm:$0xf]
    %v68 = vld [vmem:[%s0 + $0x4c] sm:$0xf]
    %v69 = vld [vmem:[%s0 + $0x50] sm:$0xf]
    %v70 = vld [vmem:[%s0 + $0x54] sm:$0xf]
    %v71 = vld [vmem:[%s0 + $0x58] sm:$0xf]
    %v72 = vld [vmem:[%s0 + $0x5c] sm:$0xf]
    %v73 = vld [vmem:[%s0 + $0x60] sm:$0xf]
    %v74 = vld [vmem:[%s0 + $0x64] sm:$0xf]
    %v75 = vld [vmem:[%s0 + $0x68] sm:$0xf]
    %v76 = vld [vmem:[%s0 + $0x6c] sm:$0xf]
    %v77 = vld [vmem:[%s0 + $0x70] sm:$0xf]
    %v78 = vld [vmem:[%s0 + $0x74] sm:$0xf]
    %v79 = vld [vmem:[%s0 + $0x78] sm:$0xf]
    %v80 = vld [vmem:[%s0 + $0x7c] sm:$0xf]
    %v81 = vld [vmem:[#allocation2] sm:$0xff]
    %v82 = vld [vmem:[#allocation2 + $0x8] sm:$0xff]
    %v83 = vld [vmem:[#allocation2 + $0x10] sm:$0xff]
    %v84 = vld [vmem:[#allocation2 + $0x18] sm:$0xff]
    %v85 = vld [vmem:[#allocation2 + $0x20] sm:$0xff]
    %v86 = vld [vmem:[#allocation2 + $0x28] sm:$0xff]
    %v87 = vld [vmem:[#allocation2 + $0x30] sm:$0xff]
    %v88 = vld [vmem:[#allocation2 + $0x38] sm:$0xff]
    %v121 = vunpack.c.l.b16 %v49
    %v122 = vunpack.c.l.b16 %v50
    %v123 = vunpack.c.l.b16 %v51
    %v124 = vunpack.c.l.b16 %v52
    %v125 = vunpack.c.l.b16 %v53
    %v126 = vunpack.c.l.b16 %v54
    %v127 = vunpack.c.l.b16 %v55
    %v128 = vunpack.c.l.b16 %v56
    %v129 = vunpack.c.l.b16 %v57
    %v130 = vunpack.c.l.b16 %v58
    %v131 = vunpack.c.l.b16 %v59
    %v132 = vunpack.c.l.b16 %v60
    %v133 = vunpack.c.l.b16 %v61
    %v134 = vunpack.c.l.b16 %v62
    %v135 = vunpack.c.l.b16 %v63
    %v136 = vunpack.c.l.b16 %v64
    %v137 = vunpack.c.l.b16 %v65
    %v138 = vunpack.c.l.b16 %v66
    %v139 = vunpack.c.l.b16 %v67
    %v140 = vunpack.c.l.b16 %v68
    %v141 = vunpack.c.l.b16 %v69
    %v142 = vunpack.c.l.b16 %v70
    %v143 = vunpack.c.l.b16 %v71
    %v144 = vunpack.c.l.b16 %v72
    %v145 = vunpack.c.l.b16 %v73
    %v146 = vunpack.c.l.b16 %v74
    %v147 = vunpack.c.l.b16 %v75
    %v148 = vunpack.c.l.b16 %v76
    %v149 = vunpack.c.l.b16 %v77
    %v150 = vunpack.c.l.b16 %v78
    %v151 = vunpack.c.l.b16 %v79
    %v152 = vunpack.c.l.b16 %v80
    %v153 = vpack.c.b16 %v122, %v121
    %v154 = vpack.c.b16 %v124, %v123
    %v155 = vpack.c.b16 %v126, %v125
    %v156 = vpack.c.b16 %v128, %v127
    %v157 = vpack.c.b16 %v130, %v129
    %v158 = vpack.c.b16 %v132, %v131
    %v159 = vpack.c.b16 %v134, %v133
    %v160 = vpack.c.b16 %v136, %v135
    %v161 = vpack.c.b16 %v138, %v137
    %v162 = vpack.c.b16 %v140, %v139
    %v163 = vpack.c.b16 %v142, %v141
    %v164 = vpack.c.b16 %v144, %v143
    %v165 = vpack.c.b16 %v146, %v145
    %v166 = vpack.c.b16 %v148, %v147
    %v167 = vpack.c.b16 %v150, %v149
    %v168 = vpack.c.b16 %v152, %v151
    %v177 = vunpack.c.l.b16 %v81
    %v178 = vunpack.c.h.b16 %v81
    %v179 = vunpack.c.l.b16 %v82
    %v180 = vunpack.c.h.b16 %v82
    %v181 = vunpack.c.l.b16 %v83
    %v182 = vunpack.c.h.b16 %v83
    %v183 = vunpack.c.l.b16 %v84
    %v184 = vunpack.c.h.b16 %v84
    %v185 = vunpack.c.l.b16 %v85
    %v186 = vunpack.c.h.b16 %v85
    %v187 = vunpack.c.l.b16 %v86
    %v188 = vunpack.c.h.b16 %v86
    %v189 = vunpack.c.l.b16 %v87
    %v190 = vunpack.c.h.b16 %v87
    %v191 = vunpack.c.l.b16 %v88
    %v192 = vunpack.c.h.b16 %v88
    %v193 = vpack.c.b16 %v179, %v177
    %v194 = vpack.c.b16 %v180, %v178
    %v195 = vpack.c.b16 %v183, %v181
    %v196 = vpack.c.b16 %v184, %v182
    %v197 = vpack.c.b16 %v187, %v185
    %v198 = vpack.c.b16 %v188, %v186
    %v199 = vpack.c.b16 %v191, %v189
    %v200 = vpack.c.b16 %v192, %v190
    %vm209 = vcmask 523264
    %v211 = vsel %vm209, %v153, 0
    %v214 = vsel %vm209, %v154, 0
    %v217 = vsel %vm209, %v155, 0
    %v220 = vsel %vm209, %v156, 0
    %v223 = vsel %vm209, %v157, 0
    %v226 = vsel %vm209, %v158, 0
    %v229 = vsel %vm209, %v159, 0
    %v232 = vsel %vm209, %v160, 0
    %v235 = vsel %vm209, %v161, 0
    %v238 = vsel %vm209, %v162, 0
    %v241 = vsel %vm209, %v163, 0
    %v244 = vsel %vm209, %v164, 0
    %v247 = vsel %vm209, %v165, 0
    %v250 = vsel %vm209, %v166, 0
    %v253 = vsel %vm209, %v167, 0
    %v256 = vsel %vm209, %v168, 0
    %258 = vmatpush.bf16.msra.mxu0 0
    %259 = vmatpush.bf16.msra.mxu0 0
    %260 = vmatpush.bf16.msra.mxu0 0
    %261 = vmatpush.bf16.msra.mxu0 0
    %262 = vmatpush.bf16.msra.mxu0 %v199
    %263 = vmatpush.bf16.msra.mxu0 %v197
    %264 = vmatpush.bf16.msra.mxu0 %v195
    %265 = vmatpush.bf16.msra.mxu0 %v193
    %266 = vmatmul.bf16.gmra.mxu0 %v211
    %v267 = vpop.f32.mrf.mxu0
    %v268 = vadd.f32 0.0, %v267
    %v269 = vpop.f32.mrf.mxu0
    %v270 = vadd.f32 0.0, %v269
    %271 = vmatmul.bf16.gmra.mxu0 %v214
    %v272 = vpop.f32.mrf.mxu0
    %v273 = vadd.f32 0.0, %v272
    %v274 = vpop.f32.mrf.mxu0
    %v275 = vadd.f32 0.0, %v274
    %276 = vmatmul.bf16.gmra.mxu0 %v217
    %v277 = vpop.f32.mrf.mxu0
    %v278 = vadd.f32 0.0, %v277
    %v279 = vpop.f32.mrf.mxu0
    %v280 = vadd.f32 0.0, %v279
    %281 = vmatmul.bf16.gmra.mxu0 %v220
    %v282 = vpop.f32.mrf.mxu0
    %v283 = vadd.f32 0.0, %v282
    %v284 = vpop.f32.mrf.mxu0
    %v285 = vadd.f32 0.0, %v284
    %286 = vmatmul.bf16.gmra.mxu0 %v223
    %v287 = vpop.f32.mrf.mxu0
    %v288 = vadd.f32 0.0, %v287
    %v289 = vpop.f32.mrf.mxu0
    %v290 = vadd.f32 0.0, %v289
    %291 = vmatmul.bf16.gmra.mxu0 %v226
    %v292 = vpop.f32.mrf.mxu0
    %v293 = vadd.f32 0.0, %v292
    %v294 = vpop.f32.mrf.mxu0
    %v295 = vadd.f32 0.0, %v294
    %296 = vmatmul.bf16.gmra.mxu0 %v229
    %v297 = vpop.f32.mrf.mxu0
    %v298 = vadd.f32 0.0, %v297
    %v299 = vpop.f32.mrf.mxu0
    %v300 = vadd.f32 0.0, %v299
    %301 = vmatmul.bf16.gmra.mxu0 %v232
    %v302 = vpop.f32.mrf.mxu0
    %v303 = vadd.f32 0.0, %v302
    %v304 = vpop.f32.mrf.mxu0
    %v305 = vadd.f32 0.0, %v304
    %306 = vmatmul.bf16.gmra.mxu0 %v235
    %v307 = vpop.f32.mrf.mxu0
    %v308 = vadd.f32 0.0, %v307
    %v309 = vpop.f32.mrf.mxu0
    %v310 = vadd.f32 0.0, %v309
    %311 = vmatmul.bf16.gmra.mxu0 %v238
    %v312 = vpop.f32.mrf.mxu0
    %v313 = vadd.f32 0.0, %v312
    %v314 = vpop.f32.mrf.mxu0
    %v315 = vadd.f32 0.0, %v314
    %316 = vmatmul.bf16.gmra.mxu0 %v241
    %v317 = vpop.f32.mrf.mxu0
    %v318 = vadd.f32 0.0, %v317
    %v319 = vpop.f32.mrf.mxu0
    %v320 = vadd.f32 0.0, %v319
    %321 = vmatmul.bf16.gmra.mxu0 %v244
    %v322 = vpop.f32.mrf.mxu0
    %v323 = vadd.f32 0.0, %v322
    %v324 = vpop.f32.mrf.mxu0
    %v325 = vadd.f32 0.0, %v324
    %326 = vmatmul.bf16.gmra.mxu0 %v247
    %v327 = vpop.f32.mrf.mxu0
    %v328 = vadd.f32 0.0, %v327
    %v329 = vpop.f32.mrf.mxu0
    %v330 = vadd.f32 0.0, %v329
    %331 = vmatmul.bf16.gmra.mxu0 %v250
    %v332 = vpop.f32.mrf.mxu0
    %v333 = vadd.f32 0.0, %v332
    %v334 = vpop.f32.mrf.mxu0
    %v335 = vadd.f32 0.0, %v334
    %336 = vmatmul.bf16.gmra.mxu0 %v253
    %v337 = vpop.f32.mrf.mxu0
    %v338 = vadd.f32 0.0, %v337
    %v339 = vpop.f32.mrf.mxu0
    %v340 = vadd.f32 0.0, %v339
    %341 = vmatmul.bf16.gmra.mxu0 %v256
    %v342 = vpop.f32.mrf.mxu0
    %v343 = vadd.f32 0.0, %v342
    %v344 = vpop.f32.mrf.mxu0
    %v345 = vadd.f32 0.0, %v344
    %346 = vdwg.mxu0
    %347 = vmatpush.bf16.msra.mxu0 0
    %348 = vmatpush.bf16.msra.mxu0 0
    %349 = vmatpush.bf16.msra.mxu0 0
    %350 = vmatpush.bf16.msra.mxu0 0
    %351 = vmatpush.bf16.msra.mxu0 %v200
    %352 = vmatpush.bf16.msra.mxu0 %v198
    %353 = vmatpush.bf16.msra.mxu0 %v196
    %354 = vmatpush.bf16.msra.mxu0 %v194
    %355 = vmatmul.bf16.gmra.mxu0 %v211
    %v356 = vpop.f32.mrf.mxu0
    %v357 = vadd.f32 0.0, %v356
    %v358 = vpop.f32.mrf.mxu0
    %v359 = vadd.f32 0.0, %v358
    %360 = vmatmul.bf16.gmra.mxu0 %v214
    %v361 = vpop.f32.mrf.mxu0
    %v362 = vadd.f32 0.0, %v361
    %v363 = vpop.f32.mrf.mxu0
    %v364 = vadd.f32 0.0, %v363
    %365 = vmatmul.bf16.gmra.mxu0 %v217
    %v366 = vpop.f32.mrf.mxu0
    %v367 = vadd.f32 0.0, %v366
    %v368 = vpop.f32.mrf.mxu0
    %v369 = vadd.f32 0.0, %v368
    %370 = vmatmul.bf16.gmra.mxu0 %v220
    %v371 = vpop.f32.mrf.mxu0
    %v372 = vadd.f32 0.0, %v371
    %v373 = vpop.f32.mrf.mxu0
    %v374 = vadd.f32 0.0, %v373
    %375 = vmatmul.bf16.gmra.mxu0 %v223
    %v376 = vpop.f32.mrf.mxu0
    %v377 = vadd.f32 0.0, %v376
    %v378 = vpop.f32.mrf.mxu0
    %v379 = vadd.f32 0.0, %v378
    %380 = vmatmul.bf16.gmra.mxu0 %v226
    %v381 = vpop.f32.mrf.mxu0
    %v382 = vadd.f32 0.0, %v381
    %v383 = vpop.f32.mrf.mxu0
    %v384 = vadd.f32 0.0, %v383
    %385 = vmatmul.bf16.gmra.mxu0 %v229
    %v386 = vpop.f32.mrf.mxu0
    %v387 = vadd.f32 0.0, %v386
    %v388 = vpop.f32.mrf.mxu0
    %v389 = vadd.f32 0.0, %v388
    %390 = vmatmul.bf16.gmra.mxu0 %v232
    %v391 = vpop.f32.mrf.mxu0
    %v392 = vadd.f32 0.0, %v391
    %v393 = vpop.f32.mrf.mxu0
    %v394 = vadd.f32 0.0, %v393
    %395 = vmatmul.bf16.gmra.mxu0 %v235
    %v396 = vpop.f32.mrf.mxu0
    %v397 = vadd.f32 0.0, %v396
    %v398 = vpop.f32.mrf.mxu0
    %v399 = vadd.f32 0.0, %v398
    %400 = vmatmul.bf16.gmra.mxu0 %v238
    %v401 = vpop.f32.mrf.mxu0
    %v402 = vadd.f32 0.0, %v401
    %v403 = vpop.f32.mrf.mxu0
    %v404 = vadd.f32 0.0, %v403
    %405 = vmatmul.bf16.gmra.mxu0 %v241
    %v406 = vpop.f32.mrf.mxu0
    %v407 = vadd.f32 0.0, %v406
    %v408 = vpop.f32.mrf.mxu0
    %v409 = vadd.f32 0.0, %v408
    %410 = vmatmul.bf16.gmra.mxu0 %v244
    %v411 = vpop.f32.mrf.mxu0
    %v412 = vadd.f32 0.0, %v411
    %v413 = vpop.f32.mrf.mxu0
    %v414 = vadd.f32 0.0, %v413
    %415 = vmatmul.bf16.gmra.mxu0 %v247
    %v416 = vpop.f32.mrf.mxu0
    %v417 = vadd.f32 0.0, %v416
    %v418 = vpop.f32.mrf.mxu0
    %v419 = vadd.f32 0.0, %v418
    %420 = vmatmul.bf16.gmra.mxu0 %v250
    %v421 = vpop.f32.mrf.mxu0
    %v422 = vadd.f32 0.0, %v421
    %v423 = vpop.f32.mrf.mxu0
    %v424 = vadd.f32 0.0, %v423
    %425 = vmatmul.bf16.gmra.mxu0 %v253
    %v426 = vpop.f32.mrf.mxu0
    %v427 = vadd.f32 0.0, %v426
    %v428 = vpop.f32.mrf.mxu0
    %v429 = vadd.f32 0.0, %v428
    %430 = vmatmul.bf16.gmra.mxu0 %v256
    %v431 = vpop.f32.mrf.mxu0
    %v432 = vadd.f32 0.0, %v431
    %v433 = vpop.f32.mrf.mxu0
    %v434 = vadd.f32 0.0, %v433
    %435 = vdwg.mxu0
    %v436 = vpack.c.bf16 %v268, %v268
    %v437 = vpack.c.bf16 %v270, %v270
    %v438 = vpack.c.bf16 %v273, %v273
    %v439 = vpack.c.bf16 %v275, %v275
    %v440 = vpack.c.bf16 %v278, %v278
    %v441 = vpack.c.bf16 %v280, %v280
    %v442 = vpack.c.bf16 %v283, %v283
    %v443 = vpack.c.bf16 %v285, %v285
    %v444 = vpack.c.bf16 %v288, %v288
    %v445 = vpack.c.bf16 %v290, %v290
    %v446 = vpack.c.bf16 %v293, %v293
    %v447 = vpack.c.bf16 %v295, %v295
    %v448 = vpack.c.bf16 %v298, %v298
    %v449 = vpack.c.bf16 %v300, %v300
    %v450 = vpack.c.bf16 %v303, %v303
    %v451 = vpack.c.bf16 %v305, %v305
    %v452 = vpack.c.bf16 %v308, %v308
    %v453 = vpack.c.bf16 %v310, %v310
    %v454 = vpack.c.bf16 %v313, %v313
    %v455 = vpack.c.bf16 %v315, %v315
    %v456 = vpack.c.bf16 %v318, %v318
    %v457 = vpack.c.bf16 %v320, %v320
    %v458 = vpack.c.bf16 %v323, %v323
    %v459 = vpack.c.bf16 %v325, %v325
    %v460 = vpack.c.bf16 %v328, %v328
    %v461 = vpack.c.bf16 %v330, %v330
    %v462 = vpack.c.bf16 %v333, %v333
    %v463 = vpack.c.bf16 %v335, %v335
    %v464 = vpack.c.bf16 %v338, %v338
    %v465 = vpack.c.bf16 %v340, %v340
    %v466 = vpack.c.bf16 %v343, %v343
    %v467 = vpack.c.bf16 %v345, %v345
    %468 = vst [vmem:[#allocation7] sm:$0xf] %v436
    %469 = vst [vmem:[#allocation7 + $0x10] sm:$0xf] %v437
    %470 = vst [vmem:[#allocation7 + $0x20] sm:$0xf] %v438
    %471 = vst [vmem:[#allocation7 + $0x30] sm:$0xf] %v439
    %472 = vst [vmem:[#allocation7 + $0x40] sm:$0xf] %v440
    %473 = vst [vmem:[#allocation7 + $0x50] sm:$0xf] %v441
    %474 = vst [vmem:[#allocation7 + $0x60] sm:$0xf] %v442
    %475 = vst [vmem:[#allocation7 + $0x70] sm:$0xf] %v443
    %476 = vst [vmem:[#allocation7 + $0x80] sm:$0xf] %v444
    %477 = vst [vmem:[#allocation7 + $0x90] sm:$0xf] %v445
    %478 = vst [vmem:[#allocation7 + $0xa0] sm:$0xf] %v446
    %479 = vst [vmem:[#allocation7 + $0xb0] sm:$0xf] %v447
    %480 = vst [vmem:[#allocation7 + $0xc0] sm:$0xf] %v448
    %481 = vst [vmem:[#allocation7 + $0xd0] sm:$0xf] %v449
    %482 = vst [vmem:[#allocation7 + $0xe0] sm:$0xf] %v450
    %483 = vst [vmem:[#allocation7 + $0xf0] sm:$0xf] %v451
    %484 = vst [vmem:[#allocation7 + $0x100] sm:$0xf] %v452
    %485 = vst [vmem:[#allocation7 + $0x110] sm:$0xf] %v453
    %486 = vst [vmem:[#allocation7 + $0x120] sm:$0xf] %v454
    %487 = vst [vmem:[#allocation7 + $0x130] sm:$0xf] %v455
    %488 = vst [vmem:[#allocation7 + $0x140] sm:$0xf] %v456
    %489 = vst [vmem:[#allocation7 + $0x150] sm:$0xf] %v457
    %490 = vst [vmem:[#allocation7 + $0x160] sm:$0xf] %v458
    %491 = vst [vmem:[#allocation7 + $0x170] sm:$0xf] %v459
    %492 = vst [vmem:[#allocation7 + $0x180] sm:$0xf] %v460
    %493 = vst [vmem:[#allocation7 + $0x190] sm:$0xf] %v461
    %494 = vst [vmem:[#allocation7 + $0x1a0] sm:$0xf] %v462
    %495 = vst [vmem:[#allocation7 + $0x1b0] sm:$0xf] %v463
    %496 = vst [vmem:[#allocation7 + $0x1c0] sm:$0xf] %v464
    %497 = vst [vmem:[#allocation7 + $0x1d0] sm:$0xf] %v465
    %498 = vst [vmem:[#allocation7 + $0x1e0] sm:$0xf] %v466
    %499 = vst [vmem:[#allocation7 + $0x1f0] sm:$0xf] %v467
    %v500 = vpack.c.bf16 %v359, %v357
    %v501 = vpack.c.bf16 %v364, %v362
    %v502 = vpack.c.bf16 %v369, %v367
    %v503 = vpack.c.bf16 %v374, %v372
    %v504 = vpack.c.bf16 %v379, %v377
    %v505 = vpack.c.bf16 %v384, %v382
    %v506 = vpack.c.bf16 %v389, %v387
    %v507 = vpack.c.bf16 %v394, %v392
    %v508 = vpack.c.bf16 %v399, %v397
    %v509 = vpack.c.bf16 %v404, %v402
    %v510 = vpack.c.bf16 %v409, %v407
    %v511 = vpack.c.bf16 %v414, %v412
    %v512 = vpack.c.bf16 %v419, %v417
    %v513 = vpack.c.bf16 %v424, %v422
    %v514 = vpack.c.bf16 %v429, %v427
    %v515 = vpack.c.bf16 %v434, %v432
    %v516 = vld [vmem:[%s2] sm:$0xff]
    %v517 = vld [vmem:[%s2 + $0x8] sm:$0xf]
    %v518 = vld [vmem:[%s2 + $0xc] sm:$0xff]
    %v519 = vld [vmem:[%s2 + $0x14] sm:$0xf]
    %v520 = vld [vmem:[%s2 + $0x18] sm:$0xff]
    %v521 = vld [vmem:[%s2 + $0x20] sm:$0xf]
    %v522 = vld [vmem:[%s2 + $0x24] sm:$0xff]
    %v523 = vld [vmem:[%s2 + $0x2c] sm:$0xf]
    %v524 = vld [vmem:[%s2 + $0x30] sm:$0xff]
    %v525 = vld [vmem:[%s2 + $0x38] sm:$0xf]
    %v526 = vld [vmem:[%s2 + $0x3c] sm:$0xff]
    %v527 = vld [vmem:[%s2 + $0x44] sm:$0xf]
    %v528 = vld [vmem:[%s2 + $0x48] sm:$0xff]
    %v529 = vld [vmem:[%s2 + $0x50] sm:$0xf]
    %v530 = vld [vmem:[%s2 + $0x54] sm:$0xff]
    %v531 = vld [vmem:[%s2 + $0x5c] sm:$0xf]
    %v532 = vld [vmem:[%s2 + $0x60] sm:$0xff]
    %v533 = vld [vmem:[%s2 + $0x68] sm:$0xf]
    %v534 = vld [vmem:[%s2 + $0x6c] sm:$0xff]
    %v535 = vld [vmem:[%s2 + $0x74] sm:$0xf]
    %v536 = vld [vmem:[%s2 + $0x78] sm:$0xff]
    %v537 = vld [vmem:[%s2 + $0x80] sm:$0xf]
    %v538 = vld [vmem:[%s2 + $0x84] sm:$0xff]
    %v539 = vld [vmem:[%s2 + $0x8c] sm:$0xf]
    %v540 = vld [vmem:[%s2 + $0x90] sm:$0xff]
    %v541 = vld [vmem:[%s2 + $0x98] sm:$0xf]
    %v542 = vld [vmem:[%s2 + $0x9c] sm:$0xff]
    %v543 = vld [vmem:[%s2 + $0xa4] sm:$0xf]
    %v544 = vld [vmem:[%s2 + $0xa8] sm:$0xff]
    %v545 = vld [vmem:[%s2 + $0xb0] sm:$0xf]
    %v546 = vld [vmem:[%s2 + $0xb4] sm:$0xff]
    %v547 = vld [vmem:[%s2 + $0xbc] sm:$0xf]
    %v548 = vld [vmem:[#allocation5] sm:$0x7]
    %v550 = vperm.slane %v548, 0
    %v551 = vperm.slane %v548, 1
    %v552 = vperm.slane %v548, 2
    %v588 = vunpack.c.l.b16 %v516
    %v589 = vunpack.c.h.b16 %v516
    %v590 = vunpack.c.l.b16 %v517
    %v591 = vunpack.c.l.b16 %v518
    %v592 = vunpack.c.h.b16 %v518
    %v593 = vunpack.c.l.b16 %v519
    %v594 = vunpack.c.l.b16 %v520
    %v595 = vunpack.c.h.b16 %v520
    %v596 = vunpack.c.l.b16 %v521
    %v597 = vunpack.c.l.b16 %v522
    %v598 = vunpack.c.h.b16 %v522
    %v599 = vunpack.c.l.b16 %v523
    %v600 = vunpack.c.l.b16 %v524
    %v601 = vunpack.c.h.b16 %v524
    %v602 = vunpack.c.l.b16 %v525
    %v603 = vunpack.c.l.b16 %v526
    %v604 = vunpack.c.h.b16 %v526
    %v605 = vunpack.c.l.b16 %v527
    %v606 = vunpack.c.l.b16 %v528
    %v607 = vunpack.c.h.b16 %v528
    %v608 = vunpack.c.l.b16 %v529
    %v609 = vunpack.c.l.b16 %v530
    %v610 = vunpack.c.h.b16 %v530
    %v611 = vunpack.c.l.b16 %v531
    %v612 = vunpack.c.l.b16 %v532
    %v613 = vunpack.c.h.b16 %v532
    %v614 = vunpack.c.l.b16 %v533
    %v615 = vunpack.c.l.b16 %v534
    %v616 = vunpack.c.h.b16 %v534
    %v617 = vunpack.c.l.b16 %v535
    %v618 = vunpack.c.l.b16 %v536
    %v619 = vunpack.c.h.b16 %v536
    %v620 = vunpack.c.l.b16 %v537
    %v621 = vunpack.c.l.b16 %v538
    %v622 = vunpack.c.h.b16 %v538
    %v623 = vunpack.c.l.b16 %v539
    %v624 = vunpack.c.l.b16 %v540
    %v625 = vunpack.c.h.b16 %v540
    %v626 = vunpack.c.l.b16 %v541
    %v627 = vunpack.c.l.b16 %v542
    %v628 = vunpack.c.h.b16 %v542
    %v629 = vunpack.c.l.b16 %v543
    %v630 = vunpack.c.l.b16 %v544
    %v631 = vunpack.c.h.b16 %v544
    %v632 = vunpack.c.l.b16 %v545
    %v633 = vunpack.c.l.b16 %v546
    %v634 = vunpack.c.h.b16 %v546
    %v635 = vunpack.c.l.b16 %v547
    %v636 = vpack.c.b16 %v591, %v588
    %v637 = vpack.c.b16 %v592, %v589
    %v638 = vpack.c.b16 %v593, %v590
    %v639 = vpack.c.b16 %v597, %v594
    %v640 = vpack.c.b16 %v598, %v595
    %v641 = vpack.c.b16 %v599, %v596
    %v642 = vpack.c.b16 %v603, %v600
    %v643 = vpack.c.b16 %v604, %v601
    %v644 = vpack.c.b16 %v605, %v602
    %v645 = vpack.c.b16 %v609, %v606
    %v646 = vpack.c.b16 %v610, %v607
    %v647 = vpack.c.b16 %v611, %v608
    %v648 = vpack.c.b16 %v615, %v612
    %v649 = vpack.c.b16 %v616, %v613
    %v650 = vpack.c.b16 %v617, %v614
    %v651 = vpack.c.b16 %v621, %v618
    %v652 = vpack.c.b16 %v622, %v619
    %v653 = vpack.c.b16 %v623, %v620
    %v654 = vpack.c.b16 %v627, %v624
    %v655 = vpack.c.b16 %v628, %v625
    %v656 = vpack.c.b16 %v629, %v626
    %v657 = vpack.c.b16 %v633, %v630
    %v658 = vpack.c.b16 %v634, %v631
    %v659 = vpack.c.b16 %v635, %v632
    %684 = vmatpush.bf16.msra.mxu0 %v657
    %685 = vmatpush.bf16.msra.mxu0 %v654
    %686 = vmatpush.bf16.msra.mxu0 %v651
    %687 = vmatpush.bf16.msra.mxu0 %v648
    %688 = vmatpush.bf16.msra.mxu0 %v645
    %689 = vmatpush.bf16.msra.mxu0 %v642
    %690 = vmatpush.bf16.msra.mxu0 %v639
    %691 = vmatpush.bf16.msra.mxu0 %v636
    %692 = vmatmul.bf16.gmra.mxu0 %v500
    %v693 = vpop.f32.mrf.mxu0
    %v694 = vadd.f32 %v550, %v693
    %v695 = vpop.f32.mrf.mxu0
    %v696 = vadd.f32 %v550, %v695
    %697 = vmatmul.bf16.gmra.mxu0 %v501
    %v698 = vpop.f32.mrf.mxu0
    %v699 = vadd.f32 %v550, %v698
    %v700 = vpop.f32.mrf.mxu0
    %v701 = vadd.f32 %v550, %v700
    %702 = vmatmul.bf16.gmra.mxu0 %v502
    %v703 = vpop.f32.mrf.mxu0
    %v704 = vadd.f32 %v550, %v703
    %v705 = vpop.f32.mrf.mxu0
    %v706 = vadd.f32 %v550, %v705
    %707 = vmatmul.bf16.gmra.mxu0 %v503
    %v708 = vpop.f32.mrf.mxu0
    %v709 = vadd.f32 %v550, %v708
    %v710 = vpop.f32.mrf.mxu0
    %v711 = vadd.f32 %v550, %v710
    %712 = vmatmul.bf16.gmra.mxu0 %v504
    %v713 = vpop.f32.mrf.mxu0
    %v714 = vadd.f32 %v550, %v713
    %v715 = vpop.f32.mrf.mxu0
    %v716 = vadd.f32 %v550, %v715
    %717 = vmatmul.bf16.gmra.mxu0 %v505
    %v718 = vpop.f32.mrf.mxu0
    %v719 = vadd.f32 %v550, %v718
    %v720 = vpop.f32.mrf.mxu0
    %v721 = vadd.f32 %v550, %v720
    %722 = vmatmul.bf16.gmra.mxu0 %v506
    %v723 = vpop.f32.mrf.mxu0
    %v724 = vadd.f32 %v550, %v723
    %v725 = vpop.f32.mrf.mxu0
    %v726 = vadd.f32 %v550, %v725
    %727 = vmatmul.bf16.gmra.mxu0 %v507
    %v728 = vpop.f32.mrf.mxu0
    %v729 = vadd.f32 %v550, %v728
    %v730 = vpop.f32.mrf.mxu0
    %v731 = vadd.f32 %v550, %v730
    %732 = vmatmul.bf16.gmra.mxu0 %v508
    %v733 = vpop.f32.mrf.mxu0
    %v734 = vadd.f32 %v550, %v733
    %v735 = vpop.f32.mrf.mxu0
    %v736 = vadd.f32 %v550, %v735
    %737 = vmatmul.bf16.gmra.mxu0 %v509
    %v738 = vpop.f32.mrf.mxu0
    %v739 = vadd.f32 %v550, %v738
    %v740 = vpop.f32.mrf.mxu0
    %v741 = vadd.f32 %v550, %v740
    %742 = vmatmul.bf16.gmra.mxu0 %v510
    %v743 = vpop.f32.mrf.mxu0
    %v744 = vadd.f32 %v550, %v743
    %v745 = vpop.f32.mrf.mxu0
    %v746 = vadd.f32 %v550, %v745
    %747 = vmatmul.bf16.gmra.mxu0 %v511
    %v748 = vpop.f32.mrf.mxu0
    %v749 = vadd.f32 %v550, %v748
    %v750 = vpop.f32.mrf.mxu0
    %v751 = vadd.f32 %v550, %v750
    %752 = vmatmul.bf16.gmra.mxu0 %v512
    %v753 = vpop.f32.mrf.mxu0
    %v754 = vadd.f32 %v550, %v753
    %v755 = vpop.f32.mrf.mxu0
    %v756 = vadd.f32 %v550, %v755
    %757 = vmatmul.bf16.gmra.mxu0 %v513
    %v758 = vpop.f32.mrf.mxu0
    %v759 = vadd.f32 %v550, %v758
    %v760 = vpop.f32.mrf.mxu0
    %v761 = vadd.f32 %v550, %v760
    %762 = vmatmul.bf16.gmra.mxu0 %v514
    %v763 = vpop.f32.mrf.mxu0
    %v764 = vadd.f32 %v550, %v763
    %v765 = vpop.f32.mrf.mxu0
    %v766 = vadd.f32 %v550, %v765
    %767 = vmatmul.bf16.gmra.mxu0 %v515
    %v768 = vpop.f32.mrf.mxu0
    %v769 = vadd.f32 %v550, %v768
    %v770 = vpop.f32.mrf.mxu0
    %v771 = vadd.f32 %v550, %v770
    %772 = vdwg.mxu0
    %773 = vmatpush.bf16.msra.mxu0 %v658
    %774 = vmatpush.bf16.msra.mxu0 %v655
    %775 = vmatpush.bf16.msra.mxu0 %v652
    %776 = vmatpush.bf16.msra.mxu0 %v649
    %777 = vmatpush.bf16.msra.mxu0 %v646
    %778 = vmatpush.bf16.msra.mxu0 %v643
    %779 = vmatpush.bf16.msra.mxu0 %v640
    %780 = vmatpush.bf16.msra.mxu0 %v637
    %781 = vmatmul.bf16.gmra.mxu0 %v500
    %v782 = vpop.f32.mrf.mxu0
    %v783 = vadd.f32 %v551, %v782
    %v784 = vpop.f32.mrf.mxu0
    %v785 = vadd.f32 %v551, %v784
    %786 = vmatmul.bf16.gmra.mxu0 %v501
    %v787 = vpop.f32.mrf.mxu0
    %v788 = vadd.f32 %v551, %v787
    %v789 = vpop.f32.mrf.mxu0
    %v790 = vadd.f32 %v551, %v789
    %791 = vmatmul.bf16.gmra.mxu0 %v502
    %v792 = vpop.f32.mrf.mxu0
    %v793 = vadd.f32 %v551, %v792
    %v794 = vpop.f32.mrf.mxu0
    %v795 = vadd.f32 %v551, %v794
    %796 = vmatmul.bf16.gmra.mxu0 %v503
    %v797 = vpop.f32.mrf.mxu0
    %v798 = vadd.f32 %v551, %v797
    %v799 = vpop.f32.mrf.mxu0
    %v800 = vadd.f32 %v551, %v799
    %801 = vmatmul.bf16.gmra.mxu0 %v504
    %v802 = vpop.f32.mrf.mxu0
    %v803 = vadd.f32 %v551, %v802
    %v804 = vpop.f32.mrf.mxu0
    %v805 = vadd.f32 %v551, %v804
    %806 = vmatmul.bf16.gmra.mxu0 %v505
    %v807 = vpop.f32.mrf.mxu0
    %v808 = vadd.f32 %v551, %v807
    %v809 = vpop.f32.mrf.mxu0
    %v810 = vadd.f32 %v551, %v809
    %811 = vmatmul.bf16.gmra.mxu0 %v506
    %v812 = vpop.f32.mrf.mxu0
    %v813 = vadd.f32 %v551, %v812
    %v814 = vpop.f32.mrf.mxu0
    %v815 = vadd.f32 %v551, %v814
    %816 = vmatmul.bf16.gmra.mxu0 %v507
    %v817 = vpop.f32.mrf.mxu0
    %v818 = vadd.f32 %v551, %v817
    %v819 = vpop.f32.mrf.mxu0
    %v820 = vadd.f32 %v551, %v819
    %821 = vmatmul.bf16.gmra.mxu0 %v508
    %v822 = vpop.f32.mrf.mxu0
    %v823 = vadd.f32 %v551, %v822
    %v824 = vpop.f32.mrf.mxu0
    %v825 = vadd.f32 %v551, %v824
    %826 = vmatmul.bf16.gmra.mxu0 %v509
    %v827 = vpop.f32.mrf.mxu0
    %v828 = vadd.f32 %v551, %v827
    %v829 = vpop.f32.mrf.mxu0
    %v830 = vadd.f32 %v551, %v829
    %831 = vmatmul.bf16.gmra.mxu0 %v510
    %v832 = vpop.f32.mrf.mxu0
    %v833 = vadd.f32 %v551, %v832
    %v834 = vpop.f32.mrf.mxu0
    %v835 = vadd.f32 %v551, %v834
    %836 = vmatmul.bf16.gmra.mxu0 %v511
    %v837 = vpop.f32.mrf.mxu0
    %v838 = vadd.f32 %v551, %v837
    %v839 = vpop.f32.mrf.mxu0
    %v840 = vadd.f32 %v551, %v839
    %841 = vmatmul.bf16.gmra.mxu0 %v512
    %v842 = vpop.f32.mrf.mxu0
    %v843 = vadd.f32 %v551, %v842
    %v844 = vpop.f32.mrf.mxu0
    %v845 = vadd.f32 %v551, %v844
    %846 = vmatmul.bf16.gmra.mxu0 %v513
    %v847 = vpop.f32.mrf.mxu0
    %v848 = vadd.f32 %v551, %v847
    %v849 = vpop.f32.mrf.mxu0
    %v850 = vadd.f32 %v551, %v849
    %851 = vmatmul.bf16.gmra.mxu0 %v514
    %v852 = vpop.f32.mrf.mxu0
    %v853 = vadd.f32 %v551, %v852
    %v854 = vpop.f32.mrf.mxu0
    %v855 = vadd.f32 %v551, %v854
    %856 = vmatmul.bf16.gmra.mxu0 %v515
    %v857 = vpop.f32.mrf.mxu0
    %v858 = vadd.f32 %v551, %v857
    %v859 = vpop.f32.mrf.mxu0
    %v860 = vadd.f32 %v551, %v859
    %861 = vdwg.mxu0
    %862 = vmatpush.bf16.msra.mxu0 %v659
    %863 = vmatpush.bf16.msra.mxu0 %v656
    %864 = vmatpush.bf16.msra.mxu0 %v653
    %865 = vmatpush.bf16.msra.mxu0 %v650
    %866 = vmatpush.bf16.msra.mxu0 %v647
    %867 = vmatpush.bf16.msra.mxu0 %v644
    %868 = vmatpush.bf16.msra.mxu0 %v641
    %869 = vmatpush.bf16.msra.mxu0 %v638
    %870 = vmatmul.bf16.gmra.mxu0 %v500
    %v871 = vpop.f32.mrf.mxu0
    %v872 = vadd.f32 %v552, %v871
    %v873 = vpop.f32.mrf.mxu0
    %v874 = vadd.f32 %v552, %v873
    %875 = vmatmul.bf16.gmra.mxu0 %v501
    %v876 = vpop.f32.mrf.mxu0
    %v877 = vadd.f32 %v552, %v876
    %v878 = vpop.f32.mrf.mxu0
    %v879 = vadd.f32 %v552, %v878
    %880 = vmatmul.bf16.gmra.mxu0 %v502
    %v881 = vpop.f32.mrf.mxu0
    %v882 = vadd.f32 %v552, %v881
    %v883 = vpop.f32.mrf.mxu0
    %v884 = vadd.f32 %v552, %v883
    %885 = vmatmul.bf16.gmra.mxu0 %v503
    %v886 = vpop.f32.mrf.mxu0
    %v887 = vadd.f32 %v552, %v886
    %v888 = vpop.f32.mrf.mxu0
    %v889 = vadd.f32 %v552, %v888
    %890 = vmatmul.bf16.gmra.mxu0 %v504
    %v891 = vpop.f32.mrf.mxu0
    %v892 = vadd.f32 %v552, %v891
    %v893 = vpop.f32.mrf.mxu0
    %v894 = vadd.f32 %v552, %v893
    %895 = vmatmul.bf16.gmra.mxu0 %v505
    %v896 = vpop.f32.mrf.mxu0
    %v897 = vadd.f32 %v552, %v896
    %v898 = vpop.f32.mrf.mxu0
    %v899 = vadd.f32 %v552, %v898
    %900 = vmatmul.bf16.gmra.mxu0 %v506
    %v901 = vpop.f32.mrf.mxu0
    %v902 = vadd.f32 %v552, %v901
    %v903 = vpop.f32.mrf.mxu0
    %v904 = vadd.f32 %v552, %v903
    %905 = vmatmul.bf16.gmra.mxu0 %v507
    %v906 = vpop.f32.mrf.mxu0
    %v907 = vadd.f32 %v552, %v906
    %v908 = vpop.f32.mrf.mxu0
    %v909 = vadd.f32 %v552, %v908
    %910 = vmatmul.bf16.gmra.mxu0 %v508
    %v911 = vpop.f32.mrf.mxu0
    %v912 = vadd.f32 %v552, %v911
    %v913 = vpop.f32.mrf.mxu0
    %v914 = vadd.f32 %v552, %v913
    %915 = vmatmul.bf16.gmra.mxu0 %v509
    %v916 = vpop.f32.mrf.mxu0
    %v917 = vadd.f32 %v552, %v916
    %v918 = vpop.f32.mrf.mxu0
    %v919 = vadd.f32 %v552, %v918
    %920 = vmatmul.bf16.gmra.mxu0 %v510
    %v921 = vpop.f32.mrf.mxu0
    %v922 = vadd.f32 %v552, %v921
    %v923 = vpop.f32.mrf.mxu0
    %v924 = vadd.f32 %v552, %v923
    %925 = vmatmul.bf16.gmra.mxu0 %v511
    %v926 = vpop.f32.mrf.mxu0
    %v927 = vadd.f32 %v552, %v926
    %v928 = vpop.f32.mrf.mxu0
    %v929 = vadd.f32 %v552, %v928
    %930 = vmatmul.bf16.gmra.mxu0 %v512
    %v931 = vpop.f32.mrf.mxu0
    %v932 = vadd.f32 %v552, %v931
    %v933 = vpop.f32.mrf.mxu0
    %v934 = vadd.f32 %v552, %v933
    %935 = vmatmul.bf16.gmra.mxu0 %v513
    %v936 = vpop.f32.mrf.mxu0
    %v937 = vadd.f32 %v552, %v936
    %v938 = vpop.f32.mrf.mxu0
    %v939 = vadd.f32 %v552, %v938
    %940 = vmatmul.bf16.gmra.mxu0 %v514
    %v941 = vpop.f32.mrf.mxu0
    %v942 = vadd.f32 %v552, %v941
    %v943 = vpop.f32.mrf.mxu0
    %v944 = vadd.f32 %v552, %v943
    %945 = vmatmul.bf16.gmra.mxu0 %v515
    %v946 = vpop.f32.mrf.mxu0
    %v947 = vadd.f32 %v552, %v946
    %v948 = vpop.f32.mrf.mxu0
    %v949 = vadd.f32 %v552, %v948
    %950 = vdwg.mxu0
    %v951 = vpack.c.bf16 %v783, %v694
    %v952 = vpack.c.bf16 %v872, %v872
    %v953 = vpack.c.bf16 %v785, %v696
    %v954 = vpack.c.bf16 %v874, %v874
    %v955 = vpack.c.bf16 %v788, %v699
    %v956 = vpack.c.bf16 %v877, %v877
    %v957 = vpack.c.bf16 %v790, %v701
    %v958 = vpack.c.bf16 %v879, %v879
    %v959 = vpack.c.bf16 %v793, %v704
    %v960 = vpack.c.bf16 %v882, %v882
    %v961 = vpack.c.bf16 %v795, %v706
    %v962 = vpack.c.bf16 %v884, %v884
    %v963 = vpack.c.bf16 %v798, %v709
    %v964 = vpack.c.bf16 %v887, %v887
    %v965 = vpack.c.bf16 %v800, %v711
    %v966 = vpack.c.bf16 %v889, %v889
    %v967 = vpack.c.bf16 %v803, %v714
    %v968 = vpack.c.bf16 %v892, %v892
    %v969 = vpack.c.bf16 %v805, %v716
    %v970 = vpack.c.bf16 %v894, %v894
    %v971 = vpack.c.bf16 %v808, %v719
    %v972 = vpack.c.bf16 %v897, %v897
    %v973 = vpack.c.bf16 %v810, %v721
    %v974 = vpack.c.bf16 %v899, %v899
    %v975 = vpack.c.bf16 %v813, %v724
    %v976 = vpack.c.bf16 %v902, %v902
    %v977 = vpack.c.bf16 %v815, %v726
    %v978 = vpack.c.bf16 %v904, %v904
    %v979 = vpack.c.bf16 %v818, %v729
    %v980 = vpack.c.bf16 %v907, %v907
    %v981 = vpack.c.bf16 %v820, %v731
    %v982 = vpack.c.bf16 %v909, %v909
    %v983 = vpack.c.bf16 %v823, %v734
    %v984 = vpack.c.bf16 %v912, %v912
    %v985 = vpack.c.bf16 %v825, %v736
    %v986 = vpack.c.bf16 %v914, %v914
    %v987 = vpack.c.bf16 %v828, %v739
    %v988 = vpack.c.bf16 %v917, %v917
    %v989 = vpack.c.bf16 %v830, %v741
    %v990 = vpack.c.bf16 %v919, %v919
    %v991 = vpack.c.bf16 %v833, %v744
    %v992 = vpack.c.bf16 %v922, %v922
    %v993 = vpack.c.bf16 %v835, %v746
    %v994 = vpack.c.bf16 %v924, %v924
    %v995 = vpack.c.bf16 %v838, %v749
    %v996 = vpack.c.bf16 %v927, %v927
    %v997 = vpack.c.bf16 %v840, %v751
    %v998 = vpack.c.bf16 %v929, %v929
    %v999 = vpack.c.bf16 %v843, %v754
    %v1000 = vpack.c.bf16 %v932, %v932
    %v1001 = vpack.c.bf16 %v845, %v756
    %v1002 = vpack.c.bf16 %v934, %v934
    %v1003 = vpack.c.bf16 %v848, %v759
    %v1004 = vpack.c.bf16 %v937, %v937
    %v1005 = vpack.c.bf16 %v850, %v761
    %v1006 = vpack.c.bf16 %v939, %v939
    %v1007 = vpack.c.bf16 %v853, %v764
    %v1008 = vpack.c.bf16 %v942, %v942
    %v1009 = vpack.c.bf16 %v855, %v766
    %v1010 = vpack.c.bf16 %v944, %v944
    %v1011 = vpack.c.bf16 %v858, %v769
    %v1012 = vpack.c.bf16 %v947, %v947
    %v1013 = vpack.c.bf16 %v860, %v771
    %v1014 = vpack.c.bf16 %v949, %v949
    %1015 = vst [vmem:[#allocation7 + $0x4] sm:$0xff] %v951
    %1016 = vst [vmem:[#allocation7 + $0xc] sm:$0xf] %v952
    %1017 = vst [vmem:[#allocation7 + $0x14] sm:$0xff] %v953
    %1018 = vst [vmem:[#allocation7 + $0x1c] sm:$0xf] %v954
    %1019 = vst [vmem:[#allocation7 + $0x24] sm:$0xff] %v955
    %1020 = vst [vmem:[#allocation7 + $0x2c] sm:$0xf] %v956
    %1021 = vst [vmem:[#allocation7 + $0x34] sm:$0xff] %v957
    %1022 = vst [vmem:[#allocation7 + $0x3c] sm:$0xf] %v958
    %1023 = vst [vmem:[#allocation7 + $0x44] sm:$0xff] %v959
    %1024 = vst [vmem:[#allocation7 + $0x4c] sm:$0xf] %v960
    %1025 = vst [vmem:[#allocation7 + $0x54] sm:$0xff] %v961
    %1026 = vst [vmem:[#allocation7 + $0x5c] sm:$0xf] %v962
    %1027 = vst [vmem:[#allocation7 + $0x64] sm:$0xff] %v963
    %1028 = vst [vmem:[#allocation7 + $0x6c] sm:$0xf] %v964
    %1029 = vst [vmem:[#allocation7 + $0x74] sm:$0xff] %v965
    %1030 = vst [vmem:[#allocation7 + $0x7c] sm:$0xf] %v966
    %1031 = vst [vmem:[#allocation7 + $0x84] sm:$0xff] %v967
    %1032 = vst [vmem:[#allocation7 + $0x8c] sm:$0xf] %v968
    %1033 = vst [vmem:[#allocation7 + $0x94] sm:$0xff] %v969
    %1034 = vst [vmem:[#allocation7 + $0x9c] sm:$0xf] %v970
    %1035 = vst [vmem:[#allocation7 + $0xa4] sm:$0xff] %v971
    %1036 = vst [vmem:[#allocation7 + $0xac] sm:$0xf] %v972
    %1037 = vst [vmem:[#allocation7 + $0xb4] sm:$0xff] %v973
    %1038 = vst [vmem:[#allocation7 + $0xbc] sm:$0xf] %v974
    %1039 = vst [vmem:[#allocation7 + $0xc4] sm:$0xff] %v975
    %1040 = vst [vmem:[#allocation7 + $0xcc] sm:$0xf] %v976
    %1041 = vst [vmem:[#allocation7 + $0xd4] sm:$0xff] %v977
    %1042 = vst [vmem:[#allocation7 + $0xdc] sm:$0xf] %v978
    %1043 = vst [vmem:[#allocation7 + $0xe4] sm:$0xff] %v979
    %1044 = vst [vmem:[#allocation7 + $0xec] sm:$0xf] %v980
    %1045 = vst [vmem:[#allocation7 + $0xf4] sm:$0xff] %v981
    %1046 = vst [vmem:[#allocation7 + $0xfc] sm:$0xf] %v982
    %1047 = vst [vmem:[#allocation7 + $0x104] sm:$0xff] %v983
    %1048 = vst [vmem:[#allocation7 + $0x10c] sm:$0xf] %v984
    %1049 = vst [vmem:[#allocation7 + $0x114] sm:$0xff] %v985
    %1050 = vst [vmem:[#allocation7 + $0x11c] sm:$0xf] %v986
    %1051 = vst [vmem:[#allocation7 + $0x124] sm:$0xff] %v987
    %1052 = vst [vmem:[#allocation7 + $0x12c] sm:$0xf] %v988
    %1053 = vst [vmem:[#allocation7 + $0x134] sm:$0xff] %v989
    %1054 = vst [vmem:[#allocation7 + $0x13c] sm:$0xf] %v990
    %1055 = vst [vmem:[#allocation7 + $0x144] sm:$0xff] %v991
    %1056 = vst [vmem:[#allocation7 + $0x14c] sm:$0xf] %v992
    %1057 = vst [vmem:[#allocation7 + $0x154] sm:$0xff] %v993
    %1058 = vst [vmem:[#allocation7 + $0x15c] sm:$0xf] %v994
    %1059 = vst [vmem:[#allocation7 + $0x164] sm:$0xff] %v995
    %1060 = vst [vmem:[#allocation7 + $0x16c] sm:$0xf] %v996
    %1061 = vst [vmem:[#allocation7 + $0x174] sm:$0xff] %v997
    %1062 = vst [vmem:[#allocation7 + $0x17c] sm:$0xf] %v998
    %1063 = vst [vmem:[#allocation7 + $0x184] sm:$0xff] %v999
    %1064 = vst [vmem:[#allocation7 + $0x18c] sm:$0xf] %v1000
    %1065 = vst [vmem:[#allocation7 + $0x194] sm:$0xff] %v1001
    %1066 = vst [vmem:[#allocation7 + $0x19c] sm:$0xf] %v1002
    %1067 = vst [vmem:[#allocation7 + $0x1a4] sm:$0xff] %v1003
    %1068 = vst [vmem:[#allocation7 + $0x1ac] sm:$0xf] %v1004
    %1069 = vst [vmem:[#allocation7 + $0x1b4] sm:$0xff] %v1005
    %1070 = vst [vmem:[#allocation7 + $0x1bc] sm:$0xf] %v1006
    %1071 = vst [vmem:[#allocation7 + $0x1c4] sm:$0xff] %v1007
    %1072 = vst [vmem:[#allocation7 + $0x1cc] sm:$0xf] %v1008
    %1073 = vst [vmem:[#allocation7 + $0x1d4] sm:$0xff] %v1009
    %1074 = vst [vmem:[#allocation7 + $0x1dc] sm:$0xf] %v1010
    %1075 = vst [vmem:[#allocation7 + $0x1e4] sm:$0xff] %v1011
    %1076 = vst [vmem:[#allocation7 + $0x1ec] sm:$0xf] %v1012
    %1077 = vst [vmem:[#allocation7 + $0x1f4] sm:$0xff] %v1013
    %1078 = vst [vmem:[#allocation7 + $0x1fc] sm:$0xf] %v1014
    // Predicated region
    $region26: #{tpu_custom_call.1} parent=1 // pred_check
      _
    $region27: #{tpu_custom_call.1} parent=1 // pred_check_branch
      %1080 = sbr.rel (0) target = $region29
    $region28: #{tpu_custom_call.1} parent=1 // pred_region
      %1082 = vsyncadd [#allocation4], 0
      %s1083 = sshll.u32 [#allocation7], 4
      %s1084 = int_to_ptr.vmem [resolvable:$true] %s1083
      %s1085 = sshll.u32 %s4, 4
      %s1086 = int_to_ptr.hbm [resolvable:$true] %s1085
      %1091 = dma.vmem_to_hbm [thread:$0]  %s1084, 8192, %s1086, [#allocation4], 256, 256, 16
    $region29: #{tpu_custom_call.1} parent=1 // pred_fallthru
      _
    // Predicated region
    $region30: #{tpu_custom_call.1} parent=1 // pred_check
      _
    $region31: #{tpu_custom_call.1} parent=1 // pred_check_branch
      %1093 = sbr.rel (0) target = $region33
    $region32: #{tpu_custom_call.1} parent=1 // pred_region
      %1095 = dma.done [#allocation4], 8192
    $region33: #{tpu_custom_call.1} parent=1 // pred_fallthru
      _
    %1096 = vsyncpa [#allocation3], 1
    %1097 = vsyncpa [#allocation6], 1
    %1098 = vsyncpa [#allocation4], 1

// kernel: tpu_custom_call.1
$region0: #{tpu_custom_call.1}
  #allocation0 [shape = 'u32[]', space=smem, size = 0x4, offset = 0x4, fixed_abs, tag = 'smem constant byte address 0x4 - core index']
  #allocation1 [shape = 'u32[72,128]{1,0:T(1,128)}', space=vmem, size = 0x9000, scoped, tag = 'internal scratch']
  %s0 = inlined_call_operand.vmem [shape: bf16[256,64], index: 0, kind: input, shape index: {}]
  %s1 = inlined_call_operand.hbm [shape: bf16[64,256], index: 1, kind: input, shape index: {}]
  %s2 = inlined_call_operand.vmem [shape: bf16[128,384], index: 2, kind: input, shape index: {}]
  %s3 = inlined_call_operand.hbm [shape: f32[1,384], index: 3, kind: input, shape index: {}]
  %s4 = inlined_call_operand.hbm [shape: bf16[256,512], index: 4, kind: output, shape index: {}]
  %s5 = sld [smem:[#allocation0]]
  $region34: #{tpu_custom_call.1} parent=0
    _
  %s7 = ssub.s32 1, %s5
  %s8 = scalar_select 0, %s7, %s5
  $region1: #{tpu_custom_call.1} parent=0
    #allocation2 [shape = 'u8[32768]{0}', space=vmem, size = 0x8000, scoped, tag = 'input window, operand 1, single buffered']
    #allocation3 [shape = 's32[1]{0}', space=sflag, size = 0x4, scoped, tag = 'scoped memory for tpu_custom_call.1']
    #allocation4 [shape = 's32[1]{0}', space=sflag, size = 0x4, scoped, tag = 'scoped memory for tpu_custom_call.1']
    #allocation5 [shape = 'u8[1536]{0}', space=vmem, size = 0x800, scoped, tag = 'input window, operand 3, single buffered']
    #allocation6 [shape = 's32[1]{0}', space=sflag, size = 0x4, scoped, tag = 'scoped memory for tpu_custom_call.1']
    #allocation7 [shape = 'u8[262144]{0}', space=vmem, size = 0x40000, scoped, tag = 'output window, operand 0, single buffered']
    %9 = vsyncpa [#allocation3], 0
    %10 = vsyncpa [#allocation6], 0
    %11 = vsyncpa [#allocation4], 0
    // Predicated region
    $region2: #{tpu_custom_call.1} parent=1 // pred_check
      _
    $region3: #{tpu_custom_call.1} parent=1 // pred_check_branch
      %13 = sbr.rel (0) target = $region5
    $region4: #{tpu_custom_call.1} parent=1 // pred_region
      _
    $region5: #{tpu_custom_call.1} parent=1 // pred_fallthru
      _
    // Predicated region
    $region6: #{tpu_custom_call.1} parent=1 // pred_check
      _
    $region7: #{tpu_custom_call.1} parent=1 // pred_check_branch
      %15 = sbr.rel (0) target = $region9
    $region8: #{tpu_custom_call.1} parent=1 // pred_region
      %17 = vsyncadd [#allocation3], 0
      %s18 = sshll.u32 %s1, 4
      %s19 = int_to_ptr.hbm [resolvable:$true] %s18
      %s20 = sshll.u32 [#allocation2], 4
      %s21 = int_to_ptr.vmem [resolvable:$true] %s20
      %26 = dma.hbm_to_vmem [thread:$0]  %s19, 1024, %s21, [#allocation3], 128, 128, 8
    $region9: #{tpu_custom_call.1} parent=1 // pred_fallthru
      _
    // Predicated region
    $region10: #{tpu_custom_call.1} parent=1 // pred_check
      _
    $region11: #{tpu_custom_call.1} parent=1 // pred_check_branch
      %28 = sbr.rel (0) target = $region13
    $region12: #{tpu_custom_call.1} parent=1 // pred_region
      _
    $region13: #{tpu_custom_call.1} parent=1 // pred_fallthru
      _
    // Predicated region
    $region14: #{tpu_custom_call.1} parent=1 // pred_check
      _
    $region15: #{tpu_custom_call.1} parent=1 // pred_check_branch
      %30 = sbr.rel (0) target = $region17
    $region16: #{tpu_custom_call.1} parent=1 // pred_region
      %32 = vsyncadd [#allocation6], 0
      %s34 = sshll.u32 %s3, 4
      %s35 = int_to_ptr.hbm [resolvable:$true] %s34
      %s36 = sshll.u32 [#allocation5], 4
      %s37 = int_to_ptr.vmem [resolvable:$true] %s36
      %39 = dma.hbm_to_vmem [thread:$0]  %s35, 48, %s37, [#allocation6]
    $region17: #{tpu_custom_call.1} parent=1 // pred_fallthru
      _
    // Predicated region
    $region18: #{tpu_custom_call.1} parent=1 // pred_check
      _
    $region19: #{tpu_custom_call.1} parent=1 // pred_check_branch
      %41 = sbr.rel (0) target = $region21
    $region20: #{tpu_custom_call.1} parent=1 // pred_region
      %43 = dma.done [#allocation3], 1024
    $region21: #{tpu_custom_call.1} parent=1 // pred_fallthru
      _
    // Predicated region
    $region22: #{tpu_custom_call.1} parent=1 // pred_check
      _
    $region23: #{tpu_custom_call.1} parent=1 // pred_check_branch
      %45 = sbr.rel (0) target = $region25
    $region24: #{tpu_custom_call.1} parent=1 // pred_region
      %47 = dma.done [#allocation6], 48
    $region25: #{tpu_custom_call.1} parent=1 // pred_fallthru
      _
    %v49 = vld [vmem:[%s0] sm:$0xf]
    %v50 = vld [vmem:[%s0 + $0x4] sm:$0xf]
    %v51 = vld [vmem:[%s0 + $0x8] sm:$0xf]
    %v52 = vld [vmem:[%s0 + $0xc] sm:$0xf]
    %v53 = vld [vmem:[%s0 + $0x10] sm:$0xf]
    %v54 = vld [vmem:[%s0 + $0x14] sm:$0xf]
    %v55 = vld [vmem:[%s0 + $0x18] sm:$0xf]
    %v56 = vld [vmem:[%s0 + $0x1c] sm:$0xf]
    %v57 = vld [vmem:[%s0 + $0x20] sm:$0xf]
    %v58 = vld [vmem:[%s0 + $0x24] sm:$0xf]
    %v59 = vld [vmem:[%s0 + $0x28] sm:$0xf]
    %v60 = vld [vmem:[%s0 + $0x2c] sm:$0xf]
    %v61 = vld [vmem:[%s0 + $0x30] sm:$0xf]
    %v62 = vld [vmem:[%s0 + $0x34] sm:$0xf]
    %v63 = vld [vmem:[%s0 + $0x38] sm:$0xf]
    %v64 = vld [vmem:[%s0 + $0x3c] sm:$0xf]
    %v65 = vld [vmem:[%s0 + $0x40] sm:$0xf]
    %v66 = vld [vmem:[%s0 + $0x44] sm:$0xf]
    %v67 = vld [vmem:[%s0 + $0x48] sm:$0xf]
    %v68 = vld [vmem:[%s0 + $0x4c] sm:$0xf]
    %v69 = vld [vmem:[%s0 + $0x50] sm:$0xf]
    %v70 = vld [vmem:[%s0 + $0x54] sm:$0xf]
    %v71 = vld [vmem:[%s0 + $0x58] sm:$0xf]
    %v72 = vld [vmem:[%s0 + $0x5c] sm:$0xf]
    %v73 = vld [vmem:[%s0 + $0x60] sm:$0xf]
    %v74 = vld [vmem:[%s0 + $0x64] sm:$0xf]
    %v75 = vld [vmem:[%s0 + $0x68] sm:$0xf]
    %v76 = vld [vmem:[%s0 + $0x6c] sm:$0xf]
    %v77 = vld [vmem:[%s0 + $0x70] sm:$0xf]
    %v78 = vld [vmem:[%s0 + $0x74] sm:$0xf]
    %v79 = vld [vmem:[%s0 + $0x78] sm:$0xf]
    %v80 = vld [vmem:[%s0 + $0x7c] sm:$0xf]
    %v81 = vld [vmem:[#allocation2] sm:$0xff]
    %v82 = vld [vmem:[#allocation2 + $0x8] sm:$0xff]
    %v83 = vld [vmem:[#allocation2 + $0x10] sm:$0xff]
    %v84 = vld [vmem:[#allocation2 + $0x18] sm:$0xff]
    %v85 = vld [vmem:[#allocation2 + $0x20] sm:$0xff]
    %v86 = vld [vmem:[#allocation2 + $0x28] sm:$0xff]
    %v87 = vld [vmem:[#allocation2 + $0x30] sm:$0xff]
    %v88 = vld [vmem:[#allocation2 + $0x38] sm:$0xff]
    %v121 = vunpack.c.l.b16 %v49
    %v122 = vunpack.c.l.b16 %v50
    %v123 = vunpack.c.l.b16 %v51
    %v124 = vunpack.c.l.b16 %v52
    %v125 = vunpack.c.l.b16 %v53
    %v126 = vunpack.c.l.b16 %v54
    %v127 = vunpack.c.l.b16 %v55
    %v128 = vunpack.c.l.b16 %v56
    %v129 = vunpack.c.l.b16 %v57
    %v130 = vunpack.c.l.b16 %v58
    %v131 = vunpack.c.l.b16 %v59
    %v132 = vunpack.c.l.b16 %v60
    %v133 = vunpack.c.l.b16 %v61
    %v134 = vunpack.c.l.b16 %v62
    %v135 = vunpack.c.l.b16 %v63
    %v136 = vunpack.c.l.b16 %v64
    %v137 = vunpack.c.l.b16 %v65
    %v138 = vunpack.c.l.b16 %v66
    %v139 = vunpack.c.l.b16 %v67
    %v140 = vunpack.c.l.b16 %v68
    %v141 = vunpack.c.l.b16 %v69
    %v142 = vunpack.c.l.b16 %v70
    %v143 = vunpack.c.l.b16 %v71
    %v144 = vunpack.c.l.b16 %v72
    %v145 = vunpack.c.l.b16 %v73
    %v146 = vunpack.c.l.b16 %v74
    %v147 = vunpack.c.l.b16 %v75
    %v148 = vunpack.c.l.b16 %v76
    %v149 = vunpack.c.l.b16 %v77
    %v150 = vunpack.c.l.b16 %v78
    %v151 = vunpack.c.l.b16 %v79
    %v152 = vunpack.c.l.b16 %v80
    %v153 = vpack.c.b16 %v122, %v121
    %v154 = vpack.c.b16 %v124, %v123
    %v155 = vpack.c.b16 %v126, %v125
    %v156 = vpack.c.b16 %v128, %v127
    %v157 = vpack.c.b16 %v130, %v129
    %v158 = vpack.c.b16 %v132, %v131
    %v159 = vpack.c.b16 %v134, %v133
    %v160 = vpack.c.b16 %v136, %v135
    %v161 = vpack.c.b16 %v138, %v137
    %v162 = vpack.c.b16 %v140, %v139
    %v163 = vpack.c.b16 %v142, %v141
    %v164 = vpack.c.b16 %v144, %v143
    %v165 = vpack.c.b16 %v146, %v145
    %v166 = vpack.c.b16 %v148, %v147
    %v167 = vpack.c.b16 %v150, %v149
    %v168 = vpack.c.b16 %v152, %v151
    %v177 = vunpack.c.l.b16 %v81
    %v178 = vunpack.c.h.b16 %v81
    %v179 = vunpack.c.l.b16 %v82
    %v180 = vunpack.c.h.b16 %v82
    %v181 = vunpack.c.l.b16 %v83
    %v182 = vunpack.c.h.b16 %v83
    %v183 = vunpack.c.l.b16 %v84
    %v184 = vunpack.c.h.b16 %v84
    %v185 = vunpack.c.l.b16 %v85
    %v186 = vunpack.c.h.b16 %v85
    %v187 = vunpack.c.l.b16 %v86
    %v188 = vunpack.c.h.b16 %v86
    %v189 = vunpack.c.l.b16 %v87
    %v190 = vunpack.c.h.b16 %v87
    %v191 = vunpack.c.l.b16 %v88
    %v192 = vunpack.c.h.b16 %v88
    %v193 = vpack.c.b16 %v179, %v177
    %v194 = vpack.c.b16 %v180, %v178
    %v195 = vpack.c.b16 %v183, %v181
    %v196 = vpack.c.b16 %v184, %v182
    %v197 = vpack.c.b16 %v187, %v185
    %v198 = vpack.c.b16 %v188, %v186
    %v199 = vpack.c.b16 %v191, %v189
    %v200 = vpack.c.b16 %v192, %v190
    %vm209 = vcmask 523264
    %v211 = vsel %vm209, %v153, 0
    %v214 = vsel %vm209, %v154, 0
    %v217 = vsel %vm209, %v155, 0
    %v220 = vsel %vm209, %v156, 0
    %v223 = vsel %vm209, %v157, 0
    %v226 = vsel %vm209, %v158, 0
    %v229 = vsel %vm209, %v159, 0
    %v232 = vsel %vm209, %v160, 0
    %v235 = vsel %vm209, %v161, 0
    %v238 = vsel %vm209, %v162, 0
    %v241 = vsel %vm209, %v163, 0
    %v244 = vsel %vm209, %v164, 0
    %v247 = vsel %vm209, %v165, 0
    %v250 = vsel %vm209, %v166, 0
    %v253 = vsel %vm209, %v167, 0
    %v256 = vsel %vm209, %v168, 0
    %258 = vmatpush.bf16.msra.mxu0 0
    %259 = vmatpush.bf16.msra.mxu0 0
    %260 = vmatpush.bf16.msra.mxu0 0
    %261 = vmatpush.bf16.msra.mxu0 0
    %262 = vmatpush.bf16.msra.mxu0 %v199
    %263 = vmatpush.bf16.msra.mxu0 %v197
    %264 = vmatpush.bf16.msra.mxu0 %v195
    %265 = vmatpush.bf16.msra.mxu0 %v193
    %266 = vmatmul.bf16.gmra.mxu0 %v211
    %v267 = vpop.f32.mrf.mxu0
    %v268 = vadd.f32 0.0, %v267
    %v269 = vpop.f32.mrf.mxu0
    %v270 = vadd.f32 0.0, %v269
    %271 = vmatmul.bf16.gmra.mxu0 %v214
    %v272 = vpop.f32.mrf.mxu0
    %v273 = vadd.f32 0.0, %v272
    %v274 = vpop.f32.mrf.mxu0
    %v275 = vadd.f32 0.0, %v274
    %276 = vmatmul.bf16.gmra.mxu0 %v217
    %v277 = vpop.f32.mrf.mxu0
    %v278 = vadd.f32 0.0, %v277
    %v279 = vpop.f32.mrf.mxu0
    %v280 = vadd.f32 0.0, %v279
    %281 = vmatmul.bf16.gmra.mxu0 %v220
    %v282 = vpop.f32.mrf.mxu0
    %v283 = vadd.f32 0.0, %v282
    %v284 = vpop.f32.mrf.mxu0
    %v285 = vadd.f32 0.0, %v284
    %286 = vmatmul.bf16.gmra.mxu0 %v223
    %v287 = vpop.f32.mrf.mxu0
    %v288 = vadd.f32 0.0, %v287
    %v289 = vpop.f32.mrf.mxu0
    %v290 = vadd.f32 0.0, %v289
    %291 = vmatmul.bf16.gmra.mxu0 %v226
    %v292 = vpop.f32.mrf.mxu0
    %v293 = vadd.f32 0.0, %v292
    %v294 = vpop.f32.mrf.mxu0
    %v295 = vadd.f32 0.0, %v294
    %296 = vmatmul.bf16.gmra.mxu0 %v229
    %v297 = vpop.f32.mrf.mxu0
    %v298 = vadd.f32 0.0, %v297
    %v299 = vpop.f32.mrf.mxu0
    %v300 = vadd.f32 0.0, %v299
    %301 = vmatmul.bf16.gmra.mxu0 %v232
    %v302 = vpop.f32.mrf.mxu0
    %v303 = vadd.f32 0.0, %v302
    %v304 = vpop.f32.mrf.mxu0
    %v305 = vadd.f32 0.0, %v304
    %306 = vmatmul.bf16.gmra.mxu0 %v235
    %v307 = vpop.f32.mrf.mxu0
    %v308 = vadd.f32 0.0, %v307
    %v309 = vpop.f32.mrf.mxu0
    %v310 = vadd.f32 0.0, %v309
    %311 = vmatmul.bf16.gmra.mxu0 %v238
    %v312 = vpop.f32.mrf.mxu0
    %v313 = vadd.f32 0.0, %v312
    %v314 = vpop.f32.mrf.mxu0
    %v315 = vadd.f32 0.0, %v314
    %316 = vmatmul.bf16.gmra.mxu0 %v241
    %v317 = vpop.f32.mrf.mxu0
    %v318 = vadd.f32 0.0, %v317
    %v319 = vpop.f32.mrf.mxu0
    %v320 = vadd.f32 0.0, %v319
    %321 = vmatmul.bf16.gmra.mxu0 %v244
    %v322 = vpop.f32.mrf.mxu0
    %v323 = vadd.f32 0.0, %v322
    %v324 = vpop.f32.mrf.mxu0
    %v325 = vadd.f32 0.0, %v324
    %326 = vmatmul.bf16.gmra.mxu0 %v247
    %v327 = vpop.f32.mrf.mxu0
    %v328 = vadd.f32 0.0, %v327
    %v329 = vpop.f32.mrf.mxu0
    %v330 = vadd.f32 0.0, %v329
    %331 = vmatmul.bf16.gmra.mxu0 %v250
    %v332 = vpop.f32.mrf.mxu0
    %v333 = vadd.f32 0.0, %v332
    %v334 = vpop.f32.mrf.mxu0
    %v335 = vadd.f32 0.0, %v334
    %336 = vmatmul.bf16.gmra.mxu0 %v253
    %v337 = vpop.f32.mrf.mxu0
    %v338 = vadd.f32 0.0, %v337
    %v339 = vpop.f32.mrf.mxu0
    %v340 = vadd.f32 0.0, %v339
    %341 = vmatmul.bf16.gmra.mxu0 %v256
    %v342 = vpop.f32.mrf.mxu0
    %v343 = vadd.f32 0.0, %v342
    %v344 = vpop.f32.mrf.mxu0
    %v345 = vadd.f32 0.0, %v344
    %346 = vdwg.mxu0
    %347 = vmatpush.bf16.msra.mxu0 0
    %348 = vmatpush.bf16.msra.mxu0 0
    %349 = vmatpush.bf16.msra.mxu0 0
    %350 = vmatpush.bf16.msra.mxu0 0
    %351 = vmatpush.bf16.msra.mxu0 %v200
    %352 = vmatpush.bf16.msra.mxu0 %v198
    %353 = vmatpush.bf16.msra.mxu0 %v196
    %354 = vmatpush.bf16.msra.mxu0 %v194
    %355 = vmatmul.bf16.gmra.mxu0 %v211
    %v356 = vpop.f32.mrf.mxu0
    %v357 = vadd.f32 0.0, %v356
    %v358 = vpop.f32.mrf.mxu0
    %v359 = vadd.f32 0.0, %v358
    %360 = vmatmul.bf16.gmra.mxu0 %v214
    %v361 = vpop.f32.mrf.mxu0
    %v362 = vadd.f32 0.0, %v361
    %v363 = vpop.f32.mrf.mxu0
    %v364 = vadd.f32 0.0, %v363
    %365 = vmatmul.bf16.gmra.mxu0 %v217
    %v366 = vpop.f32.mrf.mxu0
    %v367 = vadd.f32 0.0, %v366
    %v368 = vpop.f32.mrf.mxu0
    %v369 = vadd.f32 0.0, %v368
    %370 = vmatmul.bf16.gmra.mxu0 %v220
    %v371 = vpop.f32.mrf.mxu0
    %v372 = vadd.f32 0.0, %v371
    %v373 = vpop.f32.mrf.mxu0
    %v374 = vadd.f32 0.0, %v373
    %375 = vmatmul.bf16.gmra.mxu0 %v223
    %v376 = vpop.f32.mrf.mxu0
    %v377 = vadd.f32 0.0, %v376
    %v378 = vpop.f32.mrf.mxu0
    %v379 = vadd.f32 0.0, %v378
    %380 = vmatmul.bf16.gmra.mxu0 %v226
    %v381 = vpop.f32.mrf.mxu0
    %v382 = vadd.f32 0.0, %v381
    %v383 = vpop.f32.mrf.mxu0
    %v384 = vadd.f32 0.0, %v383
    %385 = vmatmul.bf16.gmra.mxu0 %v229
    %v386 = vpop.f32.mrf.mxu0
    %v387 = vadd.f32 0.0, %v386
    %v388 = vpop.f32.mrf.mxu0
    %v389 = vadd.f32 0.0, %v388
    %390 = vmatmul.bf16.gmra.mxu0 %v232
    %v391 = vpop.f32.mrf.mxu0
    %v392 = vadd.f32 0.0, %v391
    %v393 = vpop.f32.mrf.mxu0
    %v394 = vadd.f32 0.0, %v393
    %395 = vmatmul.bf16.gmra.mxu0 %v235
    %v396 = vpop.f32.mrf.mxu0
    %v397 = vadd.f32 0.0, %v396
    %v398 = vpop.f32.mrf.mxu0
    %v399 = vadd.f32 0.0, %v398
    %400 = vmatmul.bf16.gmra.mxu0 %v238
    %v401 = vpop.f32.mrf.mxu0
    %v402 = vadd.f32 0.0, %v401
    %v403 = vpop.f32.mrf.mxu0
    %v404 = vadd.f32 0.0, %v403
    %405 = vmatmul.bf16.gmra.mxu0 %v241
    %v406 = vpop.f32.mrf.mxu0
    %v407 = vadd.f32 0.0, %v406
    %v408 = vpop.f32.mrf.mxu0
    %v409 = vadd.f32 0.0, %v408
    %410 = vmatmul.bf16.gmra.mxu0 %v244
    %v411 = vpop.f32.mrf.mxu0
    %v412 = vadd.f32 0.0, %v411
    %v413 = vpop.f32.mrf.mxu0
    %v414 = vadd.f32 0.0, %v413
    %415 = vmatmul.bf16.gmra.mxu0 %v247
    %v416 = vpop.f32.mrf.mxu0
    %v417 = vadd.f32 0.0, %v416
    %v418 = vpop.f32.mrf.mxu0
    %v419 = vadd.f32 0.0, %v418
    %420 = vmatmul.bf16.gmra.mxu0 %v250
    %v421 = vpop.f32.mrf.mxu0
    %v422 = vadd.f32 0.0, %v421
    %v423 = vpop.f32.mrf.mxu0
    %v424 = vadd.f32 0.0, %v423
    %425 = vmatmul.bf16.gmra.mxu0 %v253
    %v426 = vpop.f32.mrf.mxu0
    %v427 = vadd.f32 0.0, %v426
    %v428 = vpop.f32.mrf.mxu0
    %v429 = vadd.f32 0.0, %v428
    %430 = vmatmul.bf16.gmra.mxu0 %v256
    %v431 = vpop.f32.mrf.mxu0
    %v432 = vadd.f32 0.0, %v431
    %v433 = vpop.f32.mrf.mxu0
    %v434 = vadd.f32 0.0, %v433
    %435 = vdwg.mxu0
    %v436 = vpack.c.bf16 %v268, %v268
    %v437 = vpack.c.bf16 %v270, %v270
    %v438 = vpack.c.bf16 %v273, %v273
    %v439 = vpack.c.bf16 %v275, %v275
    %v440 = vpack.c.bf16 %v278, %v278
    %v441 = vpack.c.bf16 %v280, %v280
    %v442 = vpack.c.bf16 %v283, %v283
    %v443 = vpack.c.bf16 %v285, %v285
    %v444 = vpack.c.bf16 %v288, %v288
    %v445 = vpack.c.bf16 %v290, %v290
    %v446 = vpack.c.bf16 %v293, %v293
    %v447 = vpack.c.bf16 %v295, %v295
    %v448 = vpack.c.bf16 %v298, %v298
    %v449 = vpack.c.bf16 %v300, %v300
    %v450 = vpack.c.bf16 %v303, %v303
    %v451 = vpack.c.bf16 %v305, %v305
    %v452 = vpack.c.bf16 %v308, %v308
    %v453 = vpack.c.bf16 %v310, %v310
    %v454 = vpack.c.bf16 %v313, %v313
    %v455 = vpack.c.bf16 %v315, %v315
    %v456 = vpack.c.bf16 %v318, %v318
    %v457 = vpack.c.bf16 %v320, %v320
    %v458 = vpack.c.bf16 %v323, %v323
    %v459 = vpack.c.bf16 %v325, %v325
    %v460 = vpack.c.bf16 %v328, %v328
    %v461 = vpack.c.bf16 %v330, %v330
    %v462 = vpack.c.bf16 %v333, %v333
    %v463 = vpack.c.bf16 %v335, %v335
    %v464 = vpack.c.bf16 %v338, %v338
    %v465 = vpack.c.bf16 %v340, %v340
    %v466 = vpack.c.bf16 %v343, %v343
    %v467 = vpack.c.bf16 %v345, %v345
    %468 = vst [vmem:[#allocation7] sm:$0xf] %v436
    %469 = vst [vmem:[#allocation7 + $0x10] sm:$0xf] %v437
    %470 = vst [vmem:[#allocation7 + $0x20] sm:$0xf] %v438
    %471 = vst [vmem:[#allocation7 + $0x30] sm:$0xf] %v439
    %472 = vst [vmem:[#allocation7 + $0x40] sm:$0xf] %v440
    %473 = vst [vmem:[#allocation7 + $0x50] sm:$0xf] %v441
    %474 = vst [vmem:[#allocation7 + $0x60] sm:$0xf] %v442
    %475 = vst [vmem:[#allocation7 + $0x70] sm:$0xf] %v443
    %476 = vst [vmem:[#allocation7 + $0x80] sm:$0xf] %v444
    %477 = vst [vmem:[#allocation7 + $0x90] sm:$0xf] %v445
    %478 = vst [vmem:[#allocation7 + $0xa0] sm:$0xf] %v446
    %479 = vst [vmem:[#allocation7 + $0xb0] sm:$0xf] %v447
    %480 = vst [vmem:[#allocation7 + $0xc0] sm:$0xf] %v448
    %481 = vst [vmem:[#allocation7 + $0xd0] sm:$0xf] %v449
    %482 = vst [vmem:[#allocation7 + $0xe0] sm:$0xf] %v450
    %483 = vst [vmem:[#allocation7 + $0xf0] sm:$0xf] %v451
    %484 = vst [vmem:[#allocation7 + $0x100] sm:$0xf] %v452
    %485 = vst [vmem:[#allocation7 + $0x110] sm:$0xf] %v453
    %486 = vst [vmem:[#allocation7 + $0x120] sm:$0xf] %v454
    %487 = vst [vmem:[#allocation7 + $0x130] sm:$0xf] %v455
    %488 = vst [vmem:[#allocation7 + $0x140] sm:$0xf] %v456
    %489 = vst [vmem:[#allocation7 + $0x150] sm:$0xf] %v457
    %490 = vst [vmem:[#allocation7 + $0x160] sm:$0xf] %v458
    %491 = vst [vmem:[#allocation7 + $0x170] sm:$0xf] %v459
    %492 = vst [vmem:[#allocation7 + $0x180] sm:$0xf] %v460
    %493 = vst [vmem:[#allocation7 + $0x190] sm:$0xf] %v461
    %494 = vst [vmem:[#allocation7 + $0x1a0] sm:$0xf] %v462
    %495 = vst [vmem:[#allocation7 + $0x1b0] sm:$0xf] %v463
    %496 = vst [vmem:[#allocation7 + $0x1c0] sm:$0xf] %v464
    %497 = vst [vmem:[#allocation7 + $0x1d0] sm:$0xf] %v465
    %498 = vst [vmem:[#allocation7 + $0x1e0] sm:$0xf] %v466
    %499 = vst [vmem:[#allocation7 + $0x1f0] sm:$0xf] %v467
    %v500 = vpack.c.bf16 %v359, %v357
    %v501 = vpack.c.bf16 %v364, %v362
    %v502 = vpack.c.bf16 %v369, %v367
    %v503 = vpack.c.bf16 %v374, %v372
    %v504 = vpack.c.bf16 %v379, %v377
    %v505 = vpack.c.bf16 %v384, %v382
    %v506 = vpack.c.bf16 %v389, %v387
    %v507 = vpack.c.bf16 %v394, %v392
    %v508 = vpack.c.bf16 %v399, %v397
    %v509 = vpack.c.bf16 %v404, %v402
    %v510 = vpack.c.bf16 %v409, %v407
    %v511 = vpack.c.bf16 %v414, %v412
    %v512 = vpack.c.bf16 %v419, %v417
    %v513 = vpack.c.bf16 %v424, %v422
    %v514 = vpack.c.bf16 %v429, %v427
    %v515 = vpack.c.bf16 %v434, %v432
    %v516 = vld [vmem:[%s2] sm:$0xff]
    %v517 = vld [vmem:[%s2 + $0x8] sm:$0xf]
    %v518 = vld [vmem:[%s2 + $0xc] sm:$0xff]
    %v519 = vld [vmem:[%s2 + $0x14] sm:$0xf]
    %v520 = vld [vmem:[%s2 + $0x18] sm:$0xff]
    %v521 = vld [vmem:[%s2 + $0x20] sm:$0xf]
    %v522 = vld [vmem:[%s2 + $0x24] sm:$0xff]
    %v523 = vld [vmem:[%s2 + $0x2c] sm:$0xf]
    %v524 = vld [vmem:[%s2 + $0x30] sm:$0xff]
    %v525 = vld [vmem:[%s2 + $0x38] sm:$0xf]
    %v526 = vld [vmem:[%s2 + $0x3c] sm:$0xff]
    %v527 = vld [vmem:[%s2 + $0x44] sm:$0xf]
    %v528 = vld [vmem:[%s2 + $0x48] sm:$0xff]
    %v529 = vld [vmem:[%s2 + $0x50] sm:$0xf]
    %v530 = vld [vmem:[%s2 + $0x54] sm:$0xff]
    %v531 = vld [vmem:[%s2 + $0x5c] sm:$0xf]
    %v532 = vld [vmem:[%s2 + $0x60] sm:$0xff]
    %v533 = vld [vmem:[%s2 + $0x68] sm:$0xf]
    %v534 = vld [vmem:[%s2 + $0x6c] sm:$0xff]
    %v535 = vld [vmem:[%s2 + $0x74] sm:$0xf]
    %v536 = vld [vmem:[%s2 + $0x78] sm:$0xff]
    %v537 = vld [vmem:[%s2 + $0x80] sm:$0xf]
    %v538 = vld [vmem:[%s2 + $0x84] sm:$0xff]
    %v539 = vld [vmem:[%s2 + $0x8c] sm:$0xf]
    %v540 = vld [vmem:[%s2 + $0x90] sm:$0xff]
    %v541 = vld [vmem:[%s2 + $0x98] sm:$0xf]
    %v542 = vld [vmem:[%s2 + $0x9c] sm:$0xff]
    %v543 = vld [vmem:[%s2 + $0xa4] sm:$0xf]
    %v544 = vld [vmem:[%s2 + $0xa8] sm:$0xff]
    %v545 = vld [vmem:[%s2 + $0xb0] sm:$0xf]
    %v546 = vld [vmem:[%s2 + $0xb4] sm:$0xff]
    %v547 = vld [vmem:[%s2 + $0xbc] sm:$0xf]
    %v548 = vld [vmem:[#allocation5] sm:$0x7]
    %v550 = vperm.slane %v548, 0
    %v551 = vperm.slane %v548, 1
    %v552 = vperm.slane %v548, 2
    %v588 = vunpack.c.l.b16 %v516
    %v589 = vunpack.c.h.b16 %v516
    %v590 = vunpack.c.l.b16 %v517
    %v591 = vunpack.c.l.b16 %v518
    %v592 = vunpack.c.h.b16 %v518
    %v593 = vunpack.c.l.b16 %v519
    %v594 = vunpack.c.l.b16 %v520
    %v595 = vunpack.c.h.b16 %v520
    %v596 = vunpack.c.l.b16 %v521
    %v597 = vunpack.c.l.b16 %v522
    %v598 = vunpack.c.h.b16 %v522
    %v599 = vunpack.c.l.b16 %v523
    %v600 = vunpack.c.l.b16 %v524
    %v601 = vunpack.c.h.b16 %v524
    %v602 = vunpack.c.l.b16 %v525
    %v603 = vunpack.c.l.b16 %v526
    %v604 = vunpack.c.h.b16 %v526
    %v605 = vunpack.c.l.b16 %v527
    %v606 = vunpack.c.l.b16 %v528
    %v607 = vunpack.c.h.b16 %v528
    %v608 = vunpack.c.l.b16 %v529
    %v609 = vunpack.c.l.b16 %v530
    %v610 = vunpack.c.h.b16 %v530
    %v611 = vunpack.c.l.b16 %v531
    %v612 = vunpack.c.l.b16 %v532
    %v613 = vunpack.c.h.b16 %v532
    %v614 = vunpack.c.l.b16 %v533
    %v615 = vunpack.c.l.b16 %v534
    %v616 = vunpack.c.h.b16 %v534
    %v617 = vunpack.c.l.b16 %v535
    %v618 = vunpack.c.l.b16 %v536
    %v619 = vunpack.c.h.b16 %v536
    %v620 = vunpack.c.l.b16 %v537
    %v621 = vunpack.c.l.b16 %v538
    %v622 = vunpack.c.h.b16 %v538
    %v623 = vunpack.c.l.b16 %v539
    %v624 = vunpack.c.l.b16 %v540
    %v625 = vunpack.c.h.b16 %v540
    %v626 = vunpack.c.l.b16 %v541
    %v627 = vunpack.c.l.b16 %v542
    %v628 = vunpack.c.h.b16 %v542
    %v629 = vunpack.c.l.b16 %v543
    %v630 = vunpack.c.l.b16 %v544
    %v631 = vunpack.c.h.b16 %v544
    %v632 = vunpack.c.l.b16 %v545
    %v633 = vunpack.c.l.b16 %v546
    %v634 = vunpack.c.h.b16 %v546
    %v635 = vunpack.c.l.b16 %v547
    %v636 = vpack.c.b16 %v591, %v588
    %v637 = vpack.c.b16 %v592, %v589
    %v638 = vpack.c.b16 %v593, %v590
    %v639 = vpack.c.b16 %v597, %v594
    %v640 = vpack.c.b16 %v598, %v595
    %v641 = vpack.c.b16 %v599, %v596
    %v642 = vpack.c.b16 %v603, %v600
    %v643 = vpack.c.b16 %v604, %v601
    %v644 = vpack.c.b16 %v605, %v602
    %v645 = vpack.c.b16 %v609, %v606
    %v646 = vpack.c.b16 %v610, %v607
    %v647 = vpack.c.b16 %v611, %v608
    %v648 = vpack.c.b16 %v615, %v612
    %v649 = vpack.c.b16 %v616, %v613
    %v650 = vpack.c.b16 %v617, %v614
    %v651 = vpack.c.b16 %v621, %v618
    %v652 = vpack.c.b16 %v622, %v619
    %v653 = vpack.c.b16 %v623, %v620
    %v654 = vpack.c.b16 %v627, %v624
    %v655 = vpack.c.b16 %v628, %v625
    %v656 = vpack.c.b16 %v629, %v626
    %v657 = vpack.c.b16 %v633, %v630
    %v658 = vpack.c.b16 %v634, %v631
    %v659 = vpack.c.b16 %v635, %v632
    %684 = vmatpush.bf16.msra.mxu0 %v657
    %685 = vmatpush.bf16.msra.mxu0 %v654
    %686 = vmatpush.bf16.msra.mxu0 %v651
    %687 = vmatpush.bf16.msra.mxu0 %v648
    %688 = vmatpush.bf16.msra.mxu0 %v645
    %689 = vmatpush.bf16.msra.mxu0 %v642
    %690 = vmatpush.bf16.msra.mxu0 %v639
    %691 = vmatpush.bf16.msra.mxu0 %v636
    %692 = vmatmul.bf16.gmra.mxu0 %v500
    %v693 = vpop.f32.mrf.mxu0
    %v694 = vadd.f32 %v550, %v693
    %v695 = vpop.f32.mrf.mxu0
    %v696 = vadd.f32 %v550, %v695
    %697 = vmatmul.bf16.gmra.mxu0 %v501
    %v698 = vpop.f32.mrf.mxu0
    %v699 = vadd.f32 %v550, %v698
    %v700 = vpop.f32.mrf.mxu0
    %v701 = vadd.f32 %v550, %v700
    %702 = vmatmul.bf16.gmra.mxu0 %v502
    %v703 = vpop.f32.mrf.mxu0
    %v704 = vadd.f32 %v550, %v703
    %v705 = vpop.f32.mrf.mxu0
    %v706 = vadd.f32 %v550, %v705
    %707 = vmatmul.bf16.gmra.mxu0 %v503
    %v708 = vpop.f32.mrf.mxu0
    %v709 = vadd.f32 %v550, %v708
    %v710 = vpop.f32.mrf.mxu0
    %v711 = vadd.f32 %v550, %v710
    %712 = vmatmul.bf16.gmra.mxu0 %v504
    %v713 = vpop.f32.mrf.mxu0
    %v714 = vadd.f32 %v550, %v713
    %v715 = vpop.f32.mrf.mxu0
    %v716 = vadd.f32 %v550, %v715
    %717 = vmatmul.bf16.gmra.mxu0 %v505
    %v718 = vpop.f32.mrf.mxu0
    %v719 = vadd.f32 %v550, %v718
    %v720 = vpop.f32.mrf.mxu0
    %v721 = vadd.f32 %v550, %v720
    %722 = vmatmul.bf16.gmra.mxu0 %v506
    %v723 = vpop.f32.mrf.mxu0
    %v724 = vadd.f32 %v550, %v723
    %v725 = vpop.f32.mrf.mxu0
    %v726 = vadd.f32 %v550, %v725
    %727 = vmatmul.bf16.gmra.mxu0 %v507
    %v728 = vpop.f32.mrf.mxu0
    %v729 = vadd.f32 %v550, %v728
    %v730 = vpop.f32.mrf.mxu0
    %v731 = vadd.f32 %v550, %v730
    %732 = vmatmul.bf16.gmra.mxu0 %v508
    %v733 = vpop.f32.mrf.mxu0
    %v734 = vadd.f32 %v550, %v733
    %v735 = vpop.f32.mrf.mxu0
    %v736 = vadd.f32 %v550, %v735
    %737 = vmatmul.bf16.gmra.mxu0 %v509
    %v738 = vpop.f32.mrf.mxu0
    %v739 = vadd.f32 %v550, %v738
    %v740 = vpop.f32.mrf.mxu0
    %v741 = vadd.f32 %v550, %v740
    %742 = vmatmul.bf16.gmra.mxu0 %v510
    %v743 = vpop.f32.mrf.mxu0
    %v744 = vadd.f32 %v550, %v743
    %v745 = vpop.f32.mrf.mxu0
    %v746 = vadd.f32 %v550, %v745
    %747 = vmatmul.bf16.gmra.mxu0 %v511
    %v748 = vpop.f32.mrf.mxu0
    %v749 = vadd.f32 %v550, %v748
    %v750 = vpop.f32.mrf.mxu0
    %v751 = vadd.f32 %v550, %v750
    %752 = vmatmul.bf16.gmra.mxu0 %v512
    %v753 = vpop.f32.mrf.mxu0
    %v754 = vadd.f32 %v550, %v753
    %v755 = vpop.f32.mrf.mxu0
    %v756 = vadd.f32 %v550, %v755
    %757 = vmatmul.bf16.gmra.mxu0 %v513
    %v758 = vpop.f32.mrf.mxu0
    %v759 = vadd.f32 %v550, %v758
    %v760 = vpop.f32.mrf.mxu0
    %v761 = vadd.f32 %v550, %v760
    %762 = vmatmul.bf16.gmra.mxu0 %v514
    %v763 = vpop.f32.mrf.mxu0
    %v764 = vadd.f32 %v550, %v763
    %v765 = vpop.f32.mrf.mxu0
    %v766 = vadd.f32 %v550, %v765
    %767 = vmatmul.bf16.gmra.mxu0 %v515
    %v768 = vpop.f32.mrf.mxu0
    %v769 = vadd.f32 %v550, %v768
    %v770 = vpop.f32.mrf.mxu0
    %v771 = vadd.f32 %v550, %v770
    %772 = vdwg.mxu0
    %773 = vmatpush.bf16.msra.mxu0 %v658
    %774 = vmatpush.bf16.msra.mxu0 %v655
    %775 = vmatpush.bf16.msra.mxu0 %v652
    %776 = vmatpush.bf16.msra.mxu0 %v649
    %777 = vmatpush.bf16.msra.mxu0 %v646
    %778 = vmatpush.bf16.msra.mxu0 %v643
    %779 = vmatpush.bf16.msra.mxu0 %v640
    %780 = vmatpush.bf16.msra.mxu0 %v637
    %781 = vmatmul.bf16.gmra.mxu0 %v500
    %v782 = vpop.f32.mrf.mxu0
    %v783 = vadd.f32 %v551, %v782
    %v784 = vpop.f32.mrf.mxu0
    %v785 = vadd.f32 %v551, %v784
    %786 = vmatmul.bf16.gmra.mxu0 %v501
    %v787 = vpop.f32.mrf.mxu0
    %v788 = vadd.f32 %v551, %v787
    %v789 = vpop.f32.mrf.mxu0
    %v790 = vadd.f32 %v551, %v789
    %791 = vmatmul.bf16.gmra.mxu0 %v502
    %v792 = vpop.f32.mrf.mxu0
    %v793 = vadd.f32 %v551, %v792
    %v794 = vpop.f32.mrf.mxu0
    %v795 = vadd.f32 %v551, %v794
    %796 = vmatmul.bf16.gmra.mxu0 %v503
    %v797 = vpop.f32.mrf.mxu0
    %v798 = vadd.f32 %v551, %v797
    %v799 = vpop.f32.mrf.mxu0
    %v800 = vadd.f32 %v551, %v799
    %801 = vmatmul.bf16.gmra.mxu0 %v504
    %v802 = vpop.f32.mrf.mxu0
    %v803 = vadd.f32 %v551, %v802
    %v804 = vpop.f32.mrf.mxu0
    %v805 = vadd.f32 %v551, %v804
    %806 = vmatmul.bf16.gmra.mxu0 %v505
    %v807 = vpop.f32.mrf.mxu0
    %v808 = vadd.f32 %v551, %v807
    %v809 = vpop.f32.mrf.mxu0
    %v810 = vadd.f32 %v551, %v809
    %811 = vmatmul.bf16.gmra.mxu0 %v506
    %v812 = vpop.f32.mrf.mxu0
    %v813 = vadd.f32 %v551, %v812
    %v814 = vpop.f32.mrf.mxu0
    %v815 = vadd.f32 %v551, %v814
    %816 = vmatmul.bf16.gmra.mxu0 %v507
    %v817 = vpop.f32.mrf.mxu0
    %v818 = vadd.f32 %v551, %v817
    %v819 = vpop.f32.mrf.mxu0
    %v820 = vadd.f32 %v551, %v819
    %821 = vmatmul.bf16.gmra.mxu0 %v508
    %v822 = vpop.f32.mrf.mxu0
    %v823 = vadd.f32 %v551, %v822
    %v824 = vpop.f32.mrf.mxu0
    %v825 = vadd.f32 %v551, %v824
    %826 = vmatmul.bf16.gmra.mxu0 %v509
    %v827 = vpop.f32.mrf.mxu0
    %v828 = vadd.f32 %v551, %v827
    %v829 = vpop.f32.mrf.mxu0
    %v830 = vadd.f32 %v551, %v829
    %831 = vmatmul.bf16.gmra.mxu0 %v510
    %v832 = vpop.f32.mrf.mxu0
    %v833 = vadd.f32 %v551, %v832
    %v834 = vpop.f32.mrf.mxu0
    %v835 = vadd.f32 %v551, %v834
    %836 = vmatmul.bf16.gmra.mxu0 %v511
    %v837 = vpop.f32.mrf.mxu0
    %v838 = vadd.f32 %v551, %v837
    %v839 = vpop.f32.mrf.mxu0
    %v840 = vadd.f32 %v551, %v839
    %841 = vmatmul.bf16.gmra.mxu0 %v512
    %v842 = vpop.f32.mrf.mxu0
    %v843 = vadd.f32 %v551, %v842
    %v844 = vpop.f32.mrf.mxu0
    %v845 = vadd.f32 %v551, %v844
    %846 = vmatmul.bf16.gmra.mxu0 %v513
    %v847 = vpop.f32.mrf.mxu0
    %v848 = vadd.f32 %v551, %v847
    %v849 = vpop.f32.mrf.mxu0
    %v850 = vadd.f32 %v551, %v849
    %851 = vmatmul.bf16.gmra.mxu0 %v514
    %v852 = vpop.f32.mrf.mxu0
    %v853 = vadd.f32 %v551, %v852
    %v854 = vpop.f32.mrf.mxu0
    %v855 = vadd.f32 %v551, %v854
    %856 = vmatmul.bf16.gmra.mxu0 %v515
    %v857 = vpop.f32.mrf.mxu0
    %v858 = vadd.f32 %v551, %v857
    %v859 = vpop.f32.mrf.mxu0
    %v860 = vadd.f32 %v551, %v859
    %861 = vdwg.mxu0
    %862 = vmatpush.bf16.msra.mxu0 %v659
    %863 = vmatpush.bf16.msra.mxu0 %v656
    %864 = vmatpush.bf16.msra.mxu0 %v653
    %865 = vmatpush.bf16.msra.mxu0 %v650
    %866 = vmatpush.bf16.msra.mxu0 %v647
    %867 = vmatpush.bf16.msra.mxu0 %v644
    %868 = vmatpush.bf16.msra.mxu0 %v641
    %869 = vmatpush.bf16.msra.mxu0 %v638
    %870 = vmatmul.bf16.gmra.mxu0 %v500
    %v871 = vpop.f32.mrf.mxu0
    %v872 = vadd.f32 %v552, %v871
    %v873 = vpop.f32.mrf.mxu0
    %v874 = vadd.f32 %v552, %v873
    %875 = vmatmul.bf16.gmra.mxu0 %v501
    %v876 = vpop.f32.mrf.mxu0
    %v877 = vadd.f32 %v552, %v876
    %v878 = vpop.f32.mrf.mxu0
    %v879 = vadd.f32 %v552, %v878
    %880 = vmatmul.bf16.gmra.mxu0 %v502
    %v881 = vpop.f32.mrf.mxu0
    %v882 = vadd.f32 %v552, %v881
    %v883 = vpop.f32.mrf.mxu0
    %v884 = vadd.f32 %v552, %v883
    %885 = vmatmul.bf16.gmra.mxu0 %v503
    %v886 = vpop.f32.mrf.mxu0
    %v887 = vadd.f32 %v552, %v886
    %v888 = vpop.f32.mrf.mxu0
    %v889 = vadd.f32 %v552, %v888
    %890 = vmatmul.bf16.gmra.mxu0 %v504
    %v891 = vpop.f32.mrf.mxu0
    %v892 = vadd.f32 %v552, %v891
    %v893 = vpop.f32.mrf.mxu0
    %v894 = vadd.f32 %v552, %v893
    %895 = vmatmul.bf16.gmra.mxu0 %v505
    %v896 = vpop.f32.mrf.mxu0
    %v897 = vadd.f32 %v552, %v896
    %v898 = vpop.f32.mrf.mxu0
    %v899 = vadd.f32 %v552, %v898
    %900 = vmatmul.bf16.gmra.mxu0 %v506
    %v901 = vpop.f32.mrf.mxu0
    %v902 = vadd.f32 %v552, %v901
    %v903 = vpop.f32.mrf.mxu0
    %v904 = vadd.f32 %v552, %v903
    %905 = vmatmul.bf16.gmra.mxu0 %v507
    %v906 = vpop.f32.mrf.mxu0
    %v907 = vadd.f32 %v552, %v906
    %v908 = vpop.f32.mrf.mxu0
    %v909 = vadd.f32 %v552, %v908
    %910 = vmatmul.bf16.gmra.mxu0 %v508
    %v911 = vpop.f32.mrf.mxu0
    %v912 = vadd.f32 %v552, %v911
    %v913 = vpop.f32.mrf.mxu0
    %v914 = vadd.f32 %v552, %v913
    %915 = vmatmul.bf16.gmra.mxu0 %v509
    %v916 = vpop.f32.mrf.mxu0
    %v917 = vadd.f32 %v552, %v916
    %v918 = vpop.f32.mrf.mxu0
    %v919 = vadd.f32 %v552, %v918
    %920 = vmatmul.bf16.gmra.mxu0 %v510
    %v921 = vpop.f32.mrf.mxu0
    %v922 = vadd.f32 %v552, %v921
    %v923 = vpop.f32.mrf.mxu0
    %v924 = vadd.f32 %v552, %v923
    %925 = vmatmul.bf16.gmra.mxu0 %v511
    %v926 = vpop.f32.mrf.mxu0
    %v927 = vadd.f32 %v552, %v926
    %v928 = vpop.f32.mrf.mxu0
    %v929 = vadd.f32 %v552, %v928
    %930 = vmatmul.bf16.gmra.mxu0 %v512
    %v931 = vpop.f32.mrf.mxu0
    %v932 = vadd.f32 %v552, %v931
    %v933 = vpop.f32.mrf.mxu0
    %v934 = vadd.f32 %v552, %v933
    %935 = vmatmul.bf16.gmra.mxu0 %v513
    %v936 = vpop.f32.mrf.mxu0
    %v937 = vadd.f32 %v552, %v936
    %v938 = vpop.f32.mrf.mxu0
    %v939 = vadd.f32 %v552, %v938
    %940 = vmatmul.bf16.gmra.mxu0 %v514
    %v941 = vpop.f32.mrf.mxu0
    %v942 = vadd.f32 %v552, %v941
    %v943 = vpop.f32.mrf.mxu0
    %v944 = vadd.f32 %v552, %v943
    %945 = vmatmul.bf16.gmra.mxu0 %v515
    %v946 = vpop.f32.mrf.mxu0
    %v947 = vadd.f32 %v552, %v946
    %v948 = vpop.f32.mrf.mxu0
    %v949 = vadd.f32 %v552, %v948
    %950 = vdwg.mxu0
    %v951 = vpack.c.bf16 %v783, %v694
    %v952 = vpack.c.bf16 %v872, %v872
    %v953 = vpack.c.bf16 %v785, %v696
    %v954 = vpack.c.bf16 %v874, %v874
    %v955 = vpack.c.bf16 %v788, %v699
    %v956 = vpack.c.bf16 %v877, %v877
    %v957 = vpack.c.bf16 %v790, %v701
    %v958 = vpack.c.bf16 %v879, %v879
    %v959 = vpack.c.bf16 %v793, %v704
    %v960 = vpack.c.bf16 %v882, %v882
    %v961 = vpack.c.bf16 %v795, %v706
    %v962 = vpack.c.bf16 %v884, %v884
    %v963 = vpack.c.bf16 %v798, %v709
    %v964 = vpack.c.bf16 %v887, %v887
    %v965 = vpack.c.bf16 %v800, %v711
    %v966 = vpack.c.bf16 %v889, %v889
    %v967 = vpack.c.bf16 %v803, %v714
    %v968 = vpack.c.bf16 %v892, %v892
    %v969 = vpack.c.bf16 %v805, %v716
    %v970 = vpack.c.bf16 %v894, %v894
    %v971 = vpack.c.bf16 %v808, %v719
    %v972 = vpack.c.bf16 %v897, %v897
    %v973 = vpack.c.bf16 %v810, %v721
    %v974 = vpack.c.bf16 %v899, %v899
    %v975 = vpack.c.bf16 %v813, %v724
    %v976 = vpack.c.bf16 %v902, %v902
    %v977 = vpack.c.bf16 %v815, %v726
    %v978 = vpack.c.bf16 %v904, %v904
    %v979 = vpack.c.bf16 %v818, %v729
    %v980 = vpack.c.bf16 %v907, %v907
    %v981 = vpack.c.bf16 %v820, %v731
    %v982 = vpack.c.bf16 %v909, %v909
    %v983 = vpack.c.bf16 %v823, %v734
    %v984 = vpack.c.bf16 %v912, %v912
    %v985 = vpack.c.bf16 %v825, %v736
    %v986 = vpack.c.bf16 %v914, %v914
    %v987 = vpack.c.bf16 %v828, %v739
    %v988 = vpack.c.bf16 %v917, %v917
    %v989 = vpack.c.bf16 %v830, %v741
    %v990 = vpack.c.bf16 %v919, %v919
    %v991 = vpack.c.bf16 %v833, %v744
    %v992 = vpack.c.bf16 %v922, %v922
    %v993 = vpack.c.bf16 %v835, %v746
    %v994 = vpack.c.bf16 %v924, %v924
    %v995 = vpack.c.bf16 %v838, %v749
    %v996 = vpack.c.bf16 %v927, %v927
    %v997 = vpack.c.bf16 %v840, %v751
    %v998 = vpack.c.bf16 %v929, %v929
    %v999 = vpack.c.bf16 %v843, %v754
    %v1000 = vpack.c.bf16 %v932, %v932
    %v1001 = vpack.c.bf16 %v845, %v756
    %v1002 = vpack.c.bf16 %v934, %v934
    %v1003 = vpack.c.bf16 %v848, %v759
    %v1004 = vpack.c.bf16 %v937, %v937
    %v1005 = vpack.c.bf16 %v850, %v761
    %v1006 = vpack.c.bf16 %v939, %v939
    %v1007 = vpack.c.bf16 %v853, %v764
    %v1008 = vpack.c.bf16 %v942, %v942
    %v1009 = vpack.c.bf16 %v855, %v766
    %v1010 = vpack.c.bf16 %v944, %v944
    %v1011 = vpack.c.bf16 %v858, %v769
    %v1012 = vpack.c.bf16 %v947, %v947
    %v1013 = vpack.c.bf16 %v860, %v771
    %v1014 = vpack.c.bf16 %v949, %v949
    %1015 = vst [vmem:[#allocation7 + $0x4] sm:$0xff] %v951
    %1016 = vst [vmem:[#allocation7 + $0xc] sm:$0xf] %v952
    %1017 = vst [vmem:[#allocation7 + $0x14] sm:$0xff] %v953
    %1018 = vst [vmem:[#allocation7 + $0x1c] sm:$0xf] %v954
    %1019 = vst [vmem:[#allocation7 + $0x24] sm:$0xff] %v955
    %1020 = vst [vmem:[#allocation7 + $0x2c] sm:$0xf] %v956
    %1021 = vst [vmem:[#allocation7 + $0x34] sm:$0xff] %v957
    %1022 = vst [vmem:[#allocation7 + $0x3c] sm:$0xf] %v958
    %1023 = vst [vmem:[#allocation7 + $0x44] sm:$0xff] %v959
    %1024 = vst [vmem:[#allocation7 + $0x4c] sm:$0xf] %v960
    %1025 = vst [vmem:[#allocation7 + $0x54] sm:$0xff] %v961
    %1026 = vst [vmem:[#allocation7 + $0x5c] sm:$0xf] %v962
    %1027 = vst [vmem:[#allocation7 + $0x64] sm:$0xff] %v963
    %1028 = vst [vmem:[#allocation7 + $0x6c] sm:$0xf] %v964
    %1029 = vst [vmem:[#allocation7 + $0x74] sm:$0xff] %v965
    %1030 = vst [vmem:[#allocation7 + $0x7c] sm:$0xf] %v966
    %1031 = vst [vmem:[#allocation7 + $0x84] sm:$0xff] %v967
    %1032 = vst [vmem:[#allocation7 + $0x8c] sm:$0xf] %v968
    %1033 = vst [vmem:[#allocation7 + $0x94] sm:$0xff] %v969
    %1034 = vst [vmem:[#allocation7 + $0x9c] sm:$0xf] %v970
    %1035 = vst [vmem:[#allocation7 + $0xa4] sm:$0xff] %v971
    %1036 = vst [vmem:[#allocation7 + $0xac] sm:$0xf] %v972
    %1037 = vst [vmem:[#allocation7 + $0xb4] sm:$0xff] %v973
    %1038 = vst [vmem:[#allocation7 + $0xbc] sm:$0xf] %v974
    %1039 = vst [vmem:[#allocation7 + $0xc4] sm:$0xff] %v975
    %1040 = vst [vmem:[#allocation7 + $0xcc] sm:$0xf] %v976
    %1041 = vst [vmem:[#allocation7 + $0xd4] sm:$0xff] %v977
    %1042 = vst [vmem:[#allocation7 + $0xdc] sm:$0xf] %v978
    %1043 = vst [vmem:[#allocation7 + $0xe4] sm:$0xff] %v979
    %1044 = vst [vmem:[#allocation7 + $0xec] sm:$0xf] %v980
    %1045 = vst [vmem:[#allocation7 + $0xf4] sm:$0xff] %v981
    %1046 = vst [vmem:[#allocation7 + $0xfc] sm:$0xf] %v982
    %1047 = vst [vmem:[#allocation7 + $0x104] sm:$0xff] %v983
    %1048 = vst [vmem:[#allocation7 + $0x10c] sm:$0xf] %v984
    %1049 = vst [vmem:[#allocation7 + $0x114] sm:$0xff] %v985
    %1050 = vst [vmem:[#allocation7 + $0x11c] sm:$0xf] %v986
    %1051 = vst [vmem:[#allocation7 + $0x124] sm:$0xff] %v987
    %1052 = vst [vmem:[#allocation7 + $0x12c] sm:$0xf] %v988
    %1053 = vst [vmem:[#allocation7 + $0x134] sm:$0xff] %v989
    %1054 = vst [vmem:[#allocation7 + $0x13c] sm:$0xf] %v990
    %1055 = vst [vmem:[#allocation7 + $0x144] sm:$0xff] %v991
    %1056 = vst [vmem:[#allocation7 + $0x14c] sm:$0xf] %v992
    %1057 = vst [vmem:[#allocation7 + $0x154] sm:$0xff] %v993
    %1058 = vst [vmem:[#allocation7 + $0x15c] sm:$0xf] %v994
    %1059 = vst [vmem:[#allocation7 + $0x164] sm:$0xff] %v995
    %1060 = vst [vmem:[#allocation7 + $0x16c] sm:$0xf] %v996
    %1061 = vst [vmem:[#allocation7 + $0x174] sm:$0xff] %v997
    %1062 = vst [vmem:[#allocation7 + $0x17c] sm:$0xf] %v998
    %1063 = vst [vmem:[#allocation7 + $0x184] sm:$0xff] %v999
    %1064 = vst [vmem:[#allocation7 + $0x18c] sm:$0xf] %v1000
    %1065 = vst [vmem:[#allocation7 + $0x194] sm:$0xff] %v1001
    %1066 = vst [vmem:[#allocation7 + $0x19c] sm:$0xf] %v1002
    %1067 = vst [vmem:[#allocation7 + $0x1a4] sm:$0xff] %v1003
    %1068 = vst [vmem:[#allocation7 + $0x1ac] sm:$0xf] %v1004
    %1069 = vst [vmem:[#allocation7 + $0x1b4] sm:$0xff] %v1005
    %1070 = vst [vmem:[#allocation7 + $0x1bc] sm:$0xf] %v1006
    %1071 = vst [vmem:[#allocation7 + $0x1c4] sm:$0xff] %v1007
    %1072 = vst [vmem:[#allocation7 + $0x1cc] sm:$0xf] %v1008
    %1073 = vst [vmem:[#allocation7 + $0x1d4] sm:$0xff] %v1009
    %1074 = vst [vmem:[#allocation7 + $0x1dc] sm:$0xf] %v1010
    %1075 = vst [vmem:[#allocation7 + $0x1e4] sm:$0xff] %v1011
    %1076 = vst [vmem:[#allocation7 + $0x1ec] sm:$0xf] %v1012
    %1077 = vst [vmem:[#allocation7 + $0x1f4] sm:$0xff] %v1013
    %1078 = vst [vmem:[#allocation7 + $0x1fc] sm:$0xf] %v1014
    // Predicated region
    $region26: #{tpu_custom_call.1} parent=1 // pred_check
      _
    $region27: #{tpu_custom_call.1} parent=1 // pred_check_branch
      %1080 = sbr.rel (0) target = $region29
    $region28: #{tpu_custom_call.1} parent=1 // pred_region
      %1082 = vsyncadd [#allocation4], 0
      %s1083 = sshll.u32 [#allocation7], 4
      %s1084 = int_to_ptr.vmem [resolvable:$true] %s1083
      %s1085 = sshll.u32 %s4, 4
      %s1086 = int_to_ptr.hbm [resolvable:$true] %s1085
      %1091 = dma.vmem_to_hbm [thread:$0]  %s1084, 8192, %s1086, [#allocation4], 256, 256, 16
    $region29: #{tpu_custom_call.1} parent=1 // pred_fallthru
      _
    // Predicated region
    $region30: #{tpu_custom_call.1} parent=1 // pred_check
      _
    $region31: #{tpu_custom_call.1} parent=1 // pred_check_branch
      %1093 = sbr.rel (0) target = $region33
    $region32: #{tpu_custom_call.1} parent=1 // pred_region
      %1095 = dma.done [#allocation4], 8192
    $region33: #{tpu_custom_call.1} parent=1 // pred_fallthru
      _
    %1096 = vsyncpa [#allocation3], 1
    %1097 = vsyncpa [#allocation6], 1
    %1098 = vsyncpa [#allocation4], 1

</llo_original>
